<compile_context>
chip_gen: v5e
topology: v5e:2x2
jax: 0.10.0
libtpu: 0.0.40
codegen_flags: <defaults>
</compile_context>

<pallas_src>
import jax
import jax.numpy as jnp
from jax import lax
from jax.experimental import pallas as pl
from jax.experimental.pallas import tpu as pltpu


def question_type_kernel(x_ref,
                         wih0_ref, whh0_ref, b0_ref,
                         w1cat_ref, b1_ref,
                         wfc_ref, bfc_ref,
                         out_ref):
    B = out_ref.shape[0]
    TB = x_ref.shape[0]
    T = TB // B
    H = whh0_ref.shape[0]            # whh0 is (H, 4H)

    # Hoist weight loads out of the time loop.
    whh0 = whh0_ref[...]
    w1cat = w1cat_ref[...]

    # (1) One batched MXU matmul for the entire layer-0 input projection,
    #     with the layer-0 combined bias folded in.
    xproj0 = (jnp.dot(x_ref[...], wih0_ref[...], preferred_element_type=jnp.float32)
              + jnp.broadcast_to(b0_ref[...], (TB, 4 * H)))

    # (2) Broadcast the layer-1 bias once (not per step).
    b1b = jnp.broadcast_to(b1_ref[...], (B, 4 * H))

    def gates(z, c):
        # Gate columns were permuted offline to (i, f, o, g):
        # a single sigmoid over the contiguous first 3H lanes, one tanh on the rest.
        s = jax.nn.sigmoid(z[:, :3 * H])
        g = jnp.tanh(z[:, 3 * H:])
        i = s[:, :H]
        f = s[:, H:2 * H]
        o = s[:, 2 * H:3 * H]
        c_new = f * c + i * g
        h_new = o * jnp.tanh(c_new)
        return h_new, c_new

    zeros = jnp.zeros((B, H), jnp.float32)
    h0 = c0 = h1 = c1 = zeros

    # (3) Fully unrolled recurrence (T is small and static): gives the LLO scheduler
    #     visibility to overlap MXU work of step t+1 with VPU/EUP work of step t.
    for t in range(T):
        # layer 0: input projection already precomputed, only the hidden matmul remains.
        z0 = xproj0[t * B:(t + 1) * B, :] + jnp.dot(
            h0, whh0, preferred_element_type=jnp.float32)
        h0, c0 = gates(z0, c0)
        # layer 1: fused input+hidden matmul against the concatenated weight.
        z1 = jnp.dot(jnp.concatenate([h0, h1], axis=-1), w1cat,
                     preferred_element_type=jnp.float32) + b1b
        h1, c1 = gates(z1, c1)

    # fc(last_hidden) == hidden[-1] @ W_fc.T + b_fc
    out_ref[...] = (jnp.dot(h1, wfc_ref[...], preferred_element_type=jnp.float32)
                    + bfc_ref[...])


@jax.jit
def question_type_forward(question_embedded, params):
    """question_embedded: (B, T, E) float32, batch_first like the PyTorch module."""
    B, T, E = question_embedded.shape
    O = params["wfc"].shape[1]

    # batch_first (B,T,E) -> time-major (T,B,E) -> flattened (T*B, E)
    x2d = jnp.transpose(question_embedded, (1, 0, 2)).astype(jnp.float32).reshape(T * B, E)

    vmem = pl.BlockSpec(memory_space=pltpu.MemorySpace.VMEM)
    return pl.pallas_call(
        question_type_kernel,
        out_shape=jax.ShapeDtypeStruct((B, O), jnp.float32),
        in_specs=[vmem] * 8,
        out_specs=vmem,
    )(x2d,
      params["wih0"], params["whh0"], params["b0"],
      params["w1cat"], params["b1"],
      params["wfc"], params["bfc"])


# ----------------------------------------------------------------------------
# Parameter construction (PyTorch-style raw weights) + kernel-layout packing.
# ----------------------------------------------------------------------------
def init_raw_params(key, word_embedding_size, hidden_dim, question_type_output_dim):
    """Synthetic params mirroring nn.LSTM(num_layers=2) + nn.Linear (PyTorch layout)."""
    E, H, O = word_embedding_size, hidden_dim, question_type_output_dim
    ks = jax.random.split(key, 10)
    bound = 1.0 / jnp.sqrt(H)

    def u(k, shape):
        return jax.random.uniform(k, shape, jnp.float32, -bound, bound)

    return {
        "w_ih0": u(ks[0], (4 * H, E)), "w_hh0": u(ks[1], (4 * H, H)),
        "b_ih0": u(ks[2], (4 * H,)),   "b_hh0": u(ks[3], (4 * H,)),
        "w_ih1": u(ks[4], (4 * H, H)), "w_hh1": u(ks[5], (4 * H, H)),
        "b_ih1": u(ks[6], (4 * H,)),   "b_hh1": u(ks[7], (4 * H,)),
        "w_fc":  u(ks[8], (O, H)),     "b_fc":  u(ks[9], (O,)),
    }


def _permute_gate_cols(w_t, H):
    # w_t: (K, 4H) with PyTorch gate blocks (i, f, g, o) -> reorder to (i, f, o, g)
    return jnp.concatenate([w_t[:, :2 * H], w_t[:, 3 * H:], w_t[:, 2 * H:3 * H]], axis=1)


def _permute_gate_vec(b, H):
    return jnp.concatenate([b[:2 * H], b[3 * H:], b[2 * H:3 * H]], axis=0)


def prepare_kernel_params(raw):
    """Transpose to right-multiply form, permute gates to (i,f,o,g), fuse layer-1 weights."""
    H = raw["w_hh0"].shape[1]
    wih0 = _permute_gate_cols(raw["w_ih0"].T, H)                       # (E, 4H)
    whh0 = _permute_gate_cols(raw["w_hh0"].T, H)                       # (H, 4H)
    b0 = _permute_gate_vec(raw["b_ih0"] + raw["b_hh0"], H)[None, :]    # (1, 4H)
    wih1 = _permute_gate_cols(raw["w_ih1"].T, H)                       # (H, 4H)
    whh1 = _permute_gate_cols(raw["w_hh1"].T, H)                       # (H, 4H)
    w1cat = jnp.concatenate([wih1, whh1], axis=0)                      # (2H, 4H)
    b1 = _permute_gate_vec(raw["b_ih1"] + raw["b_hh1"], H)[None, :]    # (1, 4H)
    return {
        "wih0": wih0, "whh0": whh0, "b0": b0,
        "w1cat": w1cat, "b1": b1,
        "wfc": raw["w_fc"].T, "bfc": raw["b_fc"][None, :],
    }


# ----------------------------------------------------------------------------
# Pure-JAX reference (faithful PyTorch nn.LSTM semantics, gate order i,f,g,o).
# ----------------------------------------------------------------------------
def question_type_reference(question_embedded, raw):
    x = question_embedded.astype(jnp.float32)
    B = x.shape[0]
    H = raw["w_hh0"].shape[1]

    def cell(x_t, h, c, w_ih, w_hh, b_ih, b_hh):
        z = x_t @ w_ih.T + b_ih + h @ w_hh.T + b_hh
        i = jax.nn.sigmoid(z[:, 0:H])
        f = jax.nn.sigmoid(z[:, H:2 * H])
        g = jnp.tanh(z[:, 2 * H:3 * H])
        o = jax.nn.sigmoid(z[:, 3 * H:4 * H])
        c_new = f * c + i * g
        return o * jnp.tanh(c_new), c_new

    def scan_fn(carry, x_t):
        h0, c0, h1, c1 = carry
        h0, c0 = cell(x_t, h0, c0, raw["w_ih0"], raw["w_hh0"], raw["b_ih0"], raw["b_hh0"])
        h1, c1 = cell(h0, h1, c1, raw["w_ih1"], raw["w_hh1"], raw["b_ih1"], raw["b_hh1"])
        return (h0, c0, h1, c1), None

    z = jnp.zeros((B, H), jnp.float32)
    (_, _, h1, _), _ = lax.scan(scan_fn, (z, z, z, z), jnp.transpose(x, (1, 0, 2)))
    return h1 @ raw["w_fc"].T + raw["b_fc"]


if __name__ == "__main__":
    # Small shapes consistent with the module: batch=2, seq=8, embed=16, hidden=32, out=8.
    B, T, E, H, O = 2, 8, 16, 32, 8

    key = jax.random.PRNGKey(0)
    k_param, k_x = jax.random.split(key)
    raw_params = init_raw_params(k_param, E, H, O)
    kernel_params = prepare_kernel_params(raw_params)
    question_embedded = jax.random.normal(k_x, (B, T, E), jnp.float32)

    logits = jax.block_until_ready(question_type_forward(question_embedded, kernel_params))
    ref = jax.block_until_ready(question_type_reference(question_embedded, raw_params))

    assert logits.shape == (B, O)
    assert jnp.allclose(logits, ref, rtol=1e-3, atol=1e-3), "mismatch vs reference"

    print("KERNEL_OK")
</pallas_src>

<mosaic_0001>
module attributes {stable_mosaic.version = 11 : i64} {
  func.func @question_type_kernel(%arg0: memref<16x16xf32, #tpu.memory_space<vmem>>, %arg1: memref<16x128xf32, #tpu.memory_space<vmem>>, %arg2: memref<32x128xf32, #tpu.memory_space<vmem>>, %arg3: memref<1x128xf32, #tpu.memory_space<vmem>>, %arg4: memref<64x128xf32, #tpu.memory_space<vmem>>, %arg5: memref<1x128xf32, #tpu.memory_space<vmem>>, %arg6: memref<32x8xf32, #tpu.memory_space<vmem>>, %arg7: memref<1x8xf32, #tpu.memory_space<vmem>>, %arg8: memref<2x8xf32, #tpu.memory_space<vmem>>) attributes {dimension_semantics = [], scalar_prefetch = 0 : i64, scratch_operands = 0 : i64, tpu.core_type = #tpu.core_type<tc>} {
    %c0 = arith.constant 0 : index
    %c0_0 = arith.constant 0 : index
    %0 = vector.load %arg2[%c0, %c0_0] : memref<32x128xf32, #tpu.memory_space<vmem>>, vector<32x128xf32>
    %c0_1 = arith.constant 0 : index
    %c0_2 = arith.constant 0 : index
    %1 = vector.load %arg4[%c0_1, %c0_2] : memref<64x128xf32, #tpu.memory_space<vmem>>, vector<64x128xf32>
    %c0_3 = arith.constant 0 : index
    %c0_4 = arith.constant 0 : index
    %2 = vector.load %arg0[%c0_3, %c0_4] : memref<16x16xf32, #tpu.memory_space<vmem>>, vector<16x16xf32>
    %c0_5 = arith.constant 0 : index
    %c0_6 = arith.constant 0 : index
    %3 = vector.load %arg1[%c0_5, %c0_6] : memref<16x128xf32, #tpu.memory_space<vmem>>, vector<16x128xf32>
    %cst = arith.constant dense<0.000000e+00> : vector<16x128xf32>
    %4 = tpu.matmul %2, %3, %cst {dimension_numbers = #tpu.dot_dimension_numbers<[1], [0], [0], [1], [0, 0, 1, 1], [], []>} : vector<16x16xf32>, vector<16x128xf32>, vector<16x128xf32> -> vector<16x128xf32>
    %c0_7 = arith.constant 0 : index
    %c0_8 = arith.constant 0 : index
    %5 = vector.load %arg3[%c0_7, %c0_8] : memref<1x128xf32, #tpu.memory_space<vmem>>, vector<1x128xf32>
    %6 = vector.shape_cast %5 : vector<1x128xf32> to vector<1x128xf32>
    %7 = vector.broadcast %6 : vector<1x128xf32> to vector<16x128xf32>
    %8 = arith.addf %4, %7 : vector<16x128xf32>
    %c0_9 = arith.constant 0 : index
    %c0_10 = arith.constant 0 : index
    %9 = vector.load %arg5[%c0_9, %c0_10] : memref<1x128xf32, #tpu.memory_space<vmem>>, vector<1x128xf32>
    %10 = vector.shape_cast %9 : vector<1x128xf32> to vector<1x128xf32>
    %11 = vector.broadcast %10 : vector<1x128xf32> to vector<2x128xf32>
    %cst_11 = arith.constant 0.000000e+00 : f32
    %12 = vector.broadcast %cst_11 : f32 to vector<2x32xf32>
    %13 = vector.extract_strided_slice %8 {offsets = [0, 0], sizes = [2, 128], strides = [1, 1]} : vector<16x128xf32> to vector<2x128xf32>
    %cst_12 = arith.constant dense<0.000000e+00> : vector<2x128xf32>
    %14 = tpu.matmul %12, %0, %cst_12 {dimension_numbers = #tpu.dot_dimension_numbers<[1], [0], [0], [1], [0, 0, 1, 1], [], []>} : vector<2x32xf32>, vector<32x128xf32>, vector<2x128xf32> -> vector<2x128xf32>
    %15 = arith.addf %13, %14 : vector<2x128xf32>
    %16 = vector.extract_strided_slice %15 {offsets = [0, 0], sizes = [2, 96], strides = [1, 1]} : vector<2x128xf32> to vector<2x96xf32>
    %17 = arith.negf %16 : vector<2x96xf32>
    %18 = math.exp %17 : vector<2x96xf32>
    %cst_13 = arith.constant 1.000000e+00 : f32
    %19 = vector.broadcast %cst_13 : f32 to vector<2x96xf32>
    %20 = arith.addf %19, %18 : vector<2x96xf32>
    %21 = arith.divf %19, %20 : vector<2x96xf32>
    %22 = vector.extract_strided_slice %15 {offsets = [0, 96], sizes = [2, 32], strides = [1, 1]} : vector<2x128xf32> to vector<2x32xf32>
    %23 = math.tanh %22 : vector<2x32xf32>
    %24 = vector.extract_strided_slice %21 {offsets = [0, 0], sizes = [2, 32], strides = [1, 1]} : vector<2x96xf32> to vector<2x32xf32>
    %25 = vector.extract_strided_slice %21 {offsets = [0, 32], sizes = [2, 32], strides = [1, 1]} : vector<2x96xf32> to vector<2x32xf32>
    %26 = vector.extract_strided_slice %21 {offsets = [0, 64], sizes = [2, 32], strides = [1, 1]} : vector<2x96xf32> to vector<2x32xf32>
    %27 = arith.mulf %25, %12 : vector<2x32xf32>
    %28 = arith.mulf %24, %23 : vector<2x32xf32>
    %29 = arith.addf %27, %28 : vector<2x32xf32>
    %30 = math.tanh %29 : vector<2x32xf32>
    %31 = arith.mulf %26, %30 : vector<2x32xf32>
    %32 = tpu.concatenate %31, %12 in 1 : vector<2x32xf32>, vector<2x32xf32> -> vector<2x64xf32>
    %cst_14 = arith.constant dense<0.000000e+00> : vector<2x128xf32>
    %33 = tpu.matmul %32, %1, %cst_14 {dimension_numbers = #tpu.dot_dimension_numbers<[1], [0], [0], [1], [0, 0, 1, 1], [], []>} : vector<2x64xf32>, vector<64x128xf32>, vector<2x128xf32> -> vector<2x128xf32>
    %34 = arith.addf %33, %11 : vector<2x128xf32>
    %35 = vector.extract_strided_slice %34 {offsets = [0, 0], sizes = [2, 96], strides = [1, 1]} : vector<2x128xf32> to vector<2x96xf32>
    %36 = arith.negf %35 : vector<2x96xf32>
    %37 = math.exp %36 : vector<2x96xf32>
    %cst_15 = arith.constant 1.000000e+00 : f32
    %38 = vector.broadcast %cst_15 : f32 to vector<2x96xf32>
    %39 = arith.addf %38, %37 : vector<2x96xf32>
    %40 = arith.divf %38, %39 : vector<2x96xf32>
    %41 = vector.extract_strided_slice %34 {offsets = [0, 96], sizes = [2, 32], strides = [1, 1]} : vector<2x128xf32> to vector<2x32xf32>
    %42 = math.tanh %41 : vector<2x32xf32>
    %43 = vector.extract_strided_slice %40 {offsets = [0, 0], sizes = [2, 32], strides = [1, 1]} : vector<2x96xf32> to vector<2x32xf32>
    %44 = vector.extract_strided_slice %40 {offsets = [0, 32], sizes = [2, 32], strides = [1, 1]} : vector<2x96xf32> to vector<2x32xf32>
    %45 = vector.extract_strided_slice %40 {offsets = [0, 64], sizes = [2, 32], strides = [1, 1]} : vector<2x96xf32> to vector<2x32xf32>
    %46 = arith.mulf %44, %12 : vector<2x32xf32>
    %47 = arith.mulf %43, %42 : vector<2x32xf32>
    %48 = arith.addf %46, %47 : vector<2x32xf32>
    %49 = math.tanh %48 : vector<2x32xf32>
    %50 = arith.mulf %45, %49 : vector<2x32xf32>
    %51 = vector.extract_strided_slice %8 {offsets = [2, 0], sizes = [2, 128], strides = [1, 1]} : vector<16x128xf32> to vector<2x128xf32>
    %cst_16 = arith.constant dense<0.000000e+00> : vector<2x128xf32>
    %52 = tpu.matmul %31, %0, %cst_16 {dimension_numbers = #tpu.dot_dimension_numbers<[1], [0], [0], [1], [0, 0, 1, 1], [], []>} : vector<2x32xf32>, vector<32x128xf32>, vector<2x128xf32> -> vector<2x128xf32>
    %53 = arith.addf %51, %52 : vector<2x128xf32>
    %54 = vector.extract_strided_slice %53 {offsets = [0, 0], sizes = [2, 96], strides = [1, 1]} : vector<2x128xf32> to vector<2x96xf32>
    %55 = arith.negf %54 : vector<2x96xf32>
    %56 = math.exp %55 : vector<2x96xf32>
    %cst_17 = arith.constant 1.000000e+00 : f32
    %57 = vector.broadcast %cst_17 : f32 to vector<2x96xf32>
    %58 = arith.addf %57, %56 : vector<2x96xf32>
    %59 = arith.divf %57, %58 : vector<2x96xf32>
    %60 = vector.extract_strided_slice %53 {offsets = [0, 96], sizes = [2, 32], strides = [1, 1]} : vector<2x128xf32> to vector<2x32xf32>
    %61 = math.tanh %60 : vector<2x32xf32>
    %62 = vector.extract_strided_slice %59 {offsets = [0, 0], sizes = [2, 32], strides = [1, 1]} : vector<2x96xf32> to vector<2x32xf32>
    %63 = vector.extract_strided_slice %59 {offsets = [0, 32], sizes = [2, 32], strides = [1, 1]} : vector<2x96xf32> to vector<2x32xf32>
    %64 = vector.extract_strided_slice %59 {offsets = [0, 64], sizes = [2, 32], strides = [1, 1]} : vector<2x96xf32> to vector<2x32xf32>
    %65 = arith.mulf %63, %29 : vector<2x32xf32>
    %66 = arith.mulf %62, %61 : vector<2x32xf32>
    %67 = arith.addf %65, %66 : vector<2x32xf32>
    %68 = math.tanh %67 : vector<2x32xf32>
    %69 = arith.mulf %64, %68 : vector<2x32xf32>
    %70 = tpu.concatenate %69, %50 in 1 : vector<2x32xf32>, vector<2x32xf32> -> vector<2x64xf32>
    %cst_18 = arith.constant dense<0.000000e+00> : vector<2x128xf32>
    %71 = tpu.matmul %70, %1, %cst_18 {dimension_numbers = #tpu.dot_dimension_numbers<[1], [0], [0], [1], [0, 0, 1, 1], [], []>} : vector<2x64xf32>, vector<64x128xf32>, vector<2x128xf32> -> vector<2x128xf32>
    %72 = arith.addf %71, %11 : vector<2x128xf32>
    %73 = vector.extract_strided_slice %72 {offsets = [0, 0], sizes = [2, 96], strides = [1, 1]} : vector<2x128xf32> to vector<2x96xf32>
    %74 = arith.negf %73 : vector<2x96xf32>
    %75 = math.exp %74 : vector<2x96xf32>
    %cst_19 = arith.constant 1.000000e+00 : f32
    %76 = vector.broadcast %cst_19 : f32 to vector<2x96xf32>
    %77 = arith.addf %76, %75 : vector<2x96xf32>
    %78 = arith.divf %76, %77 : vector<2x96xf32>
    %79 = vector.extract_strided_slice %72 {offsets = [0, 96], sizes = [2, 32], strides = [1, 1]} : vector<2x128xf32> to vector<2x32xf32>
    %80 = math.tanh %79 : vector<2x32xf32>
    %81 = vector.extract_strided_slice %78 {offsets = [0, 0], sizes = [2, 32], strides = [1, 1]} : vector<2x96xf32> to vector<2x32xf32>
    %82 = vector.extract_strided_slice %78 {offsets = [0, 32], sizes = [2, 32], strides = [1, 1]} : vector<2x96xf32> to vector<2x32xf32>
    %83 = vector.extract_strided_slice %78 {offsets = [0, 64], sizes = [2, 32], strides = [1, 1]} : vector<2x96xf32> to vector<2x32xf32>
    %84 = arith.mulf %82, %48 : vector<2x32xf32>
    %85 = arith.mulf %81, %80 : vector<2x32xf32>
    %86 = arith.addf %84, %85 : vector<2x32xf32>
    %87 = math.tanh %86 : vector<2x32xf32>
    %88 = arith.mulf %83, %87 : vector<2x32xf32>
    %89 = vector.extract_strided_slice %8 {offsets = [4, 0], sizes = [2, 128], strides = [1, 1]} : vector<16x128xf32> to vector<2x128xf32>
    %cst_20 = arith.constant dense<0.000000e+00> : vector<2x128xf32>
    %90 = tpu.matmul %69, %0, %cst_20 {dimension_numbers = #tpu.dot_dimension_numbers<[1], [0], [0], [1], [0, 0, 1, 1], [], []>} : vector<2x32xf32>, vector<32x128xf32>, vector<2x128xf32> -> vector<2x128xf32>
    %91 = arith.addf %89, %90 : vector<2x128xf32>
    %92 = vector.extract_strided_slice %91 {offsets = [0, 0], sizes = [2, 96], strides = [1, 1]} : vector<2x128xf32> to vector<2x96xf32>
    %93 = arith.negf %92 : vector<2x96xf32>
    %94 = math.exp %93 : vector<2x96xf32>
    %cst_21 = arith.constant 1.000000e+00 : f32
    %95 = vector.broadcast %cst_21 : f32 to vector<2x96xf32>
    %96 = arith.addf %95, %94 : vector<2x96xf32>
    %97 = arith.divf %95, %96 : vector<2x96xf32>
    %98 = vector.extract_strided_slice %91 {offsets = [0, 96], sizes = [2, 32], strides = [1, 1]} : vector<2x128xf32> to vector<2x32xf32>
    %99 = math.tanh %98 : vector<2x32xf32>
    %100 = vector.extract_strided_slice %97 {offsets = [0, 0], sizes = [2, 32], strides = [1, 1]} : vector<2x96xf32> to vector<2x32xf32>
    %101 = vector.extract_strided_slice %97 {offsets = [0, 32], sizes = [2, 32], strides = [1, 1]} : vector<2x96xf32> to vector<2x32xf32>
    %102 = vector.extract_strided_slice %97 {offsets = [0, 64], sizes = [2, 32], strides = [1, 1]} : vector<2x96xf32> to vector<2x32xf32>
    %103 = arith.mulf %101, %67 : vector<2x32xf32>
    %104 = arith.mulf %100, %99 : vector<2x32xf32>
    %105 = arith.addf %103, %104 : vector<2x32xf32>
    %106 = math.tanh %105 : vector<2x32xf32>
    %107 = arith.mulf %102, %106 : vector<2x32xf32>
    %108 = tpu.concatenate %107, %88 in 1 : vector<2x32xf32>, vector<2x32xf32> -> vector<2x64xf32>
    %cst_22 = arith.constant dense<0.000000e+00> : vector<2x128xf32>
    %109 = tpu.matmul %108, %1, %cst_22 {dimension_numbers = #tpu.dot_dimension_numbers<[1], [0], [0], [1], [0, 0, 1, 1], [], []>} : vector<2x64xf32>, vector<64x128xf32>, vector<2x128xf32> -> vector<2x128xf32>
    %110 = arith.addf %109, %11 : vector<2x128xf32>
    %111 = vector.extract_strided_slice %110 {offsets = [0, 0], sizes = [2, 96], strides = [1, 1]} : vector<2x128xf32> to vector<2x96xf32>
    %112 = arith.negf %111 : vector<2x96xf32>
    %113 = math.exp %112 : vector<2x96xf32>
    %cst_23 = arith.constant 1.000000e+00 : f32
    %114 = vector.broadcast %cst_23 : f32 to vector<2x96xf32>
    %115 = arith.addf %114, %113 : vector<2x96xf32>
    %116 = arith.divf %114, %115 : vector<2x96xf32>
    %117 = vector.extract_strided_slice %110 {offsets = [0, 96], sizes = [2, 32], strides = [1, 1]} : vector<2x128xf32> to vector<2x32xf32>
    %118 = math.tanh %117 : vector<2x32xf32>
    %119 = vector.extract_strided_slice %116 {offsets = [0, 0], sizes = [2, 32], strides = [1, 1]} : vector<2x96xf32> to vector<2x32xf32>
    %120 = vector.extract_strided_slice %116 {offsets = [0, 32], sizes = [2, 32], strides = [1, 1]} : vector<2x96xf32> to vector<2x32xf32>
    %121 = vector.extract_strided_slice %116 {offsets = [0, 64], sizes = [2, 32], strides = [1, 1]} : vector<2x96xf32> to vector<2x32xf32>
    %122 = arith.mulf %120, %86 : vector<2x32xf32>
    %123 = arith.mulf %119, %118 : vector<2x32xf32>
    %124 = arith.addf %122, %123 : vector<2x32xf32>
    %125 = math.tanh %124 : vector<2x32xf32>
    %126 = arith.mulf %121, %125 : vector<2x32xf32>
    %127 = vector.extract_strided_slice %8 {offsets = [6, 0], sizes = [2, 128], strides = [1, 1]} : vector<16x128xf32> to vector<2x128xf32>
    %cst_24 = arith.constant dense<0.000000e+00> : vector<2x128xf32>
    %128 = tpu.matmul %107, %0, %cst_24 {dimension_numbers = #tpu.dot_dimension_numbers<[1], [0], [0], [1], [0, 0, 1, 1], [], []>} : vector<2x32xf32>, vector<32x128xf32>, vector<2x128xf32> -> vector<2x128xf32>
    %129 = arith.addf %127, %128 : vector<2x128xf32>
    %130 = vector.extract_strided_slice %129 {offsets = [0, 0], sizes = [2, 96], strides = [1, 1]} : vector<2x128xf32> to vector<2x96xf32>
    %131 = arith.negf %130 : vector<2x96xf32>
    %132 = math.exp %131 : vector<2x96xf32>
    %cst_25 = arith.constant 1.000000e+00 : f32
    %133 = vector.broadcast %cst_25 : f32 to vector<2x96xf32>
    %134 = arith.addf %133, %132 : vector<2x96xf32>
    %135 = arith.divf %133, %134 : vector<2x96xf32>
    %136 = vector.extract_strided_slice %129 {offsets = [0, 96], sizes = [2, 32], strides = [1, 1]} : vector<2x128xf32> to vector<2x32xf32>
    %137 = math.tanh %136 : vector<2x32xf32>
    %138 = vector.extract_strided_slice %135 {offsets = [0, 0], sizes = [2, 32], strides = [1, 1]} : vector<2x96xf32> to vector<2x32xf32>
    %139 = vector.extract_strided_slice %135 {offsets = [0, 32], sizes = [2, 32], strides = [1, 1]} : vector<2x96xf32> to vector<2x32xf32>
    %140 = vector.extract_strided_slice %135 {offsets = [0, 64], sizes = [2, 32], strides = [1, 1]} : vector<2x96xf32> to vector<2x32xf32>
    %141 = arith.mulf %139, %105 : vector<2x32xf32>
    %142 = arith.mulf %138, %137 : vector<2x32xf32>
    %143 = arith.addf %141, %142 : vector<2x32xf32>
    %144 = math.tanh %143 : vector<2x32xf32>
    %145 = arith.mulf %140, %144 : vector<2x32xf32>
    %146 = tpu.concatenate %145, %126 in 1 : vector<2x32xf32>, vector<2x32xf32> -> vector<2x64xf32>
    %cst_26 = arith.constant dense<0.000000e+00> : vector<2x128xf32>
    %147 = tpu.matmul %146, %1, %cst_26 {dimension_numbers = #tpu.dot_dimension_numbers<[1], [0], [0], [1], [0, 0, 1, 1], [], []>} : vector<2x64xf32>, vector<64x128xf32>, vector<2x128xf32> -> vector<2x128xf32>
    %148 = arith.addf %147, %11 : vector<2x128xf32>
    %149 = vector.extract_strided_slice %148 {offsets = [0, 0], sizes = [2, 96], strides = [1, 1]} : vector<2x128xf32> to vector<2x96xf32>
    %150 = arith.negf %149 : vector<2x96xf32>
    %151 = math.exp %150 : vector<2x96xf32>
    %cst_27 = arith.constant 1.000000e+00 : f32
    %152 = vector.broadcast %cst_27 : f32 to vector<2x96xf32>
    %153 = arith.addf %152, %151 : vector<2x96xf32>
    %154 = arith.divf %152, %153 : vector<2x96xf32>
    %155 = vector.extract_strided_slice %148 {offsets = [0, 96], sizes = [2, 32], strides = [1, 1]} : vector<2x128xf32> to vector<2x32xf32>
    %156 = math.tanh %155 : vector<2x32xf32>
    %157 = vector.extract_strided_slice %154 {offsets = [0, 0], sizes = [2, 32], strides = [1, 1]} : vector<2x96xf32> to vector<2x32xf32>
    %158 = vector.extract_strided_slice %154 {offsets = [0, 32], sizes = [2, 32], strides = [1, 1]} : vector<2x96xf32> to vector<2x32xf32>
    %159 = vector.extract_strided_slice %154 {offsets = [0, 64], sizes = [2, 32], strides = [1, 1]} : vector<2x96xf32> to vector<2x32xf32>
    %160 = arith.mulf %158, %124 : vector<2x32xf32>
    %161 = arith.mulf %157, %156 : vector<2x32xf32>
    %162 = arith.addf %160, %161 : vector<2x32xf32>
    %163 = math.tanh %162 : vector<2x32xf32>
    %164 = arith.mulf %159, %163 : vector<2x32xf32>
    %165 = vector.extract_strided_slice %8 {offsets = [8, 0], sizes = [2, 128], strides = [1, 1]} : vector<16x128xf32> to vector<2x128xf32>
    %cst_28 = arith.constant dense<0.000000e+00> : vector<2x128xf32>
    %166 = tpu.matmul %145, %0, %cst_28 {dimension_numbers = #tpu.dot_dimension_numbers<[1], [0], [0], [1], [0, 0, 1, 1], [], []>} : vector<2x32xf32>, vector<32x128xf32>, vector<2x128xf32> -> vector<2x128xf32>
    %167 = arith.addf %165, %166 : vector<2x128xf32>
    %168 = vector.extract_strided_slice %167 {offsets = [0, 0], sizes = [2, 96], strides = [1, 1]} : vector<2x128xf32> to vector<2x96xf32>
    %169 = arith.negf %168 : vector<2x96xf32>
    %170 = math.exp %169 : vector<2x96xf32>
    %cst_29 = arith.constant 1.000000e+00 : f32
    %171 = vector.broadcast %cst_29 : f32 to vector<2x96xf32>
    %172 = arith.addf %171, %170 : vector<2x96xf32>
    %173 = arith.divf %171, %172 : vector<2x96xf32>
    %174 = vector.extract_strided_slice %167 {offsets = [0, 96], sizes = [2, 32], strides = [1, 1]} : vector<2x128xf32> to vector<2x32xf32>
    %175 = math.tanh %174 : vector<2x32xf32>
    %176 = vector.extract_strided_slice %173 {offsets = [0, 0], sizes = [2, 32], strides = [1, 1]} : vector<2x96xf32> to vector<2x32xf32>
    %177 = vector.extract_strided_slice %173 {offsets = [0, 32], sizes = [2, 32], strides = [1, 1]} : vector<2x96xf32> to vector<2x32xf32>
    %178 = vector.extract_strided_slice %173 {offsets = [0, 64], sizes = [2, 32], strides = [1, 1]} : vector<2x96xf32> to vector<2x32xf32>
    %179 = arith.mulf %177, %143 : vector<2x32xf32>
    %180 = arith.mulf %176, %175 : vector<2x32xf32>
    %181 = arith.addf %179, %180 : vector<2x32xf32>
    %182 = math.tanh %181 : vector<2x32xf32>
    %183 = arith.mulf %178, %182 : vector<2x32xf32>
    %184 = tpu.concatenate %183, %164 in 1 : vector<2x32xf32>, vector<2x32xf32> -> vector<2x64xf32>
    %cst_30 = arith.constant dense<0.000000e+00> : vector<2x128xf32>
    %185 = tpu.matmul %184, %1, %cst_30 {dimension_numbers = #tpu.dot_dimension_numbers<[1], [0], [0], [1], [0, 0, 1, 1], [], []>} : vector<2x64xf32>, vector<64x128xf32>, vector<2x128xf32> -> vector<2x128xf32>
    %186 = arith.addf %185, %11 : vector<2x128xf32>
    %187 = vector.extract_strided_slice %186 {offsets = [0, 0], sizes = [2, 96], strides = [1, 1]} : vector<2x128xf32> to vector<2x96xf32>
    %188 = arith.negf %187 : vector<2x96xf32>
    %189 = math.exp %188 : vector<2x96xf32>
    %cst_31 = arith.constant 1.000000e+00 : f32
    %190 = vector.broadcast %cst_31 : f32 to vector<2x96xf32>
    %191 = arith.addf %190, %189 : vector<2x96xf32>
    %192 = arith.divf %190, %191 : vector<2x96xf32>
    %193 = vector.extract_strided_slice %186 {offsets = [0, 96], sizes = [2, 32], strides = [1, 1]} : vector<2x128xf32> to vector<2x32xf32>
    %194 = math.tanh %193 : vector<2x32xf32>
    %195 = vector.extract_strided_slice %192 {offsets = [0, 0], sizes = [2, 32], strides = [1, 1]} : vector<2x96xf32> to vector<2x32xf32>
    %196 = vector.extract_strided_slice %192 {offsets = [0, 32], sizes = [2, 32], strides = [1, 1]} : vector<2x96xf32> to vector<2x32xf32>
    %197 = vector.extract_strided_slice %192 {offsets = [0, 64], sizes = [2, 32], strides = [1, 1]} : vector<2x96xf32> to vector<2x32xf32>
    %198 = arith.mulf %196, %162 : vector<2x32xf32>
    %199 = arith.mulf %195, %194 : vector<2x32xf32>
    %200 = arith.addf %198, %199 : vector<2x32xf32>
    %201 = math.tanh %200 : vector<2x32xf32>
    %202 = arith.mulf %197, %201 : vector<2x32xf32>
    %203 = vector.extract_strided_slice %8 {offsets = [10, 0], sizes = [2, 128], strides = [1, 1]} : vector<16x128xf32> to vector<2x128xf32>
    %cst_32 = arith.constant dense<0.000000e+00> : vector<2x128xf32>
    %204 = tpu.matmul %183, %0, %cst_32 {dimension_numbers = #tpu.dot_dimension_numbers<[1], [0], [0], [1], [0, 0, 1, 1], [], []>} : vector<2x32xf32>, vector<32x128xf32>, vector<2x128xf32> -> vector<2x128xf32>
    %205 = arith.addf %203, %204 : vector<2x128xf32>
    %206 = vector.extract_strided_slice %205 {offsets = [0, 0], sizes = [2, 96], strides = [1, 1]} : vector<2x128xf32> to vector<2x96xf32>
    %207 = arith.negf %206 : vector<2x96xf32>
    %208 = math.exp %207 : vector<2x96xf32>
    %cst_33 = arith.constant 1.000000e+00 : f32
    %209 = vector.broadcast %cst_33 : f32 to vector<2x96xf32>
    %210 = arith.addf %209, %208 : vector<2x96xf32>
    %211 = arith.divf %209, %210 : vector<2x96xf32>
    %212 = vector.extract_strided_slice %205 {offsets = [0, 96], sizes = [2, 32], strides = [1, 1]} : vector<2x128xf32> to vector<2x32xf32>
    %213 = math.tanh %212 : vector<2x32xf32>
    %214 = vector.extract_strided_slice %211 {offsets = [0, 0], sizes = [2, 32], strides = [1, 1]} : vector<2x96xf32> to vector<2x32xf32>
    %215 = vector.extract_strided_slice %211 {offsets = [0, 32], sizes = [2, 32], strides = [1, 1]} : vector<2x96xf32> to vector<2x32xf32>
    %216 = vector.extract_strided_slice %211 {offsets = [0, 64], sizes = [2, 32], strides = [1, 1]} : vector<2x96xf32> to vector<2x32xf32>
    %217 = arith.mulf %215, %181 : vector<2x32xf32>
    %218 = arith.mulf %214, %213 : vector<2x32xf32>
    %219 = arith.addf %217, %218 : vector<2x32xf32>
    %220 = math.tanh %219 : vector<2x32xf32>
    %221 = arith.mulf %216, %220 : vector<2x32xf32>
    %222 = tpu.concatenate %221, %202 in 1 : vector<2x32xf32>, vector<2x32xf32> -> vector<2x64xf32>
    %cst_34 = arith.constant dense<0.000000e+00> : vector<2x128xf32>
    %223 = tpu.matmul %222, %1, %cst_34 {dimension_numbers = #tpu.dot_dimension_numbers<[1], [0], [0], [1], [0, 0, 1, 1], [], []>} : vector<2x64xf32>, vector<64x128xf32>, vector<2x128xf32> -> vector<2x128xf32>
    %224 = arith.addf %223, %11 : vector<2x128xf32>
    %225 = vector.extract_strided_slice %224 {offsets = [0, 0], sizes = [2, 96], strides = [1, 1]} : vector<2x128xf32> to vector<2x96xf32>
    %226 = arith.negf %225 : vector<2x96xf32>
    %227 = math.exp %226 : vector<2x96xf32>
    %cst_35 = arith.constant 1.000000e+00 : f32
    %228 = vector.broadcast %cst_35 : f32 to vector<2x96xf32>
    %229 = arith.addf %228, %227 : vector<2x96xf32>
    %230 = arith.divf %228, %229 : vector<2x96xf32>
    %231 = vector.extract_strided_slice %224 {offsets = [0, 96], sizes = [2, 32], strides = [1, 1]} : vector<2x128xf32> to vector<2x32xf32>
    %232 = math.tanh %231 : vector<2x32xf32>
    %233 = vector.extract_strided_slice %230 {offsets = [0, 0], sizes = [2, 32], strides = [1, 1]} : vector<2x96xf32> to vector<2x32xf32>
    %234 = vector.extract_strided_slice %230 {offsets = [0, 32], sizes = [2, 32], strides = [1, 1]} : vector<2x96xf32> to vector<2x32xf32>
    %235 = vector.extract_strided_slice %230 {offsets = [0, 64], sizes = [2, 32], strides = [1, 1]} : vector<2x96xf32> to vector<2x32xf32>
    %236 = arith.mulf %234, %200 : vector<2x32xf32>
    %237 = arith.mulf %233, %232 : vector<2x32xf32>
    %238 = arith.addf %236, %237 : vector<2x32xf32>
    %239 = math.tanh %238 : vector<2x32xf32>
    %240 = arith.mulf %235, %239 : vector<2x32xf32>
    %241 = vector.extract_strided_slice %8 {offsets = [12, 0], sizes = [2, 128], strides = [1, 1]} : vector<16x128xf32> to vector<2x128xf32>
    %cst_36 = arith.constant dense<0.000000e+00> : vector<2x128xf32>
    %242 = tpu.matmul %221, %0, %cst_36 {dimension_numbers = #tpu.dot_dimension_numbers<[1], [0], [0], [1], [0, 0, 1, 1], [], []>} : vector<2x32xf32>, vector<32x128xf32>, vector<2x128xf32> -> vector<2x128xf32>
    %243 = arith.addf %241, %242 : vector<2x128xf32>
    %244 = vector.extract_strided_slice %243 {offsets = [0, 0], sizes = [2, 96], strides = [1, 1]} : vector<2x128xf32> to vector<2x96xf32>
    %245 = arith.negf %244 : vector<2x96xf32>
    %246 = math.exp %245 : vector<2x96xf32>
    %cst_37 = arith.constant 1.000000e+00 : f32
    %247 = vector.broadcast %cst_37 : f32 to vector<2x96xf32>
    %248 = arith.addf %247, %246 : vector<2x96xf32>
    %249 = arith.divf %247, %248 : vector<2x96xf32>
    %250 = vector.extract_strided_slice %243 {offsets = [0, 96], sizes = [2, 32], strides = [1, 1]} : vector<2x128xf32> to vector<2x32xf32>
    %251 = math.tanh %250 : vector<2x32xf32>
    %252 = vector.extract_strided_slice %249 {offsets = [0, 0], sizes = [2, 32], strides = [1, 1]} : vector<2x96xf32> to vector<2x32xf32>
    %253 = vector.extract_strided_slice %249 {offsets = [0, 32], sizes = [2, 32], strides = [1, 1]} : vector<2x96xf32> to vector<2x32xf32>
    %254 = vector.extract_strided_slice %249 {offsets = [0, 64], sizes = [2, 32], strides = [1, 1]} : vector<2x96xf32> to vector<2x32xf32>
    %255 = arith.mulf %253, %219 : vector<2x32xf32>
    %256 = arith.mulf %252, %251 : vector<2x32xf32>
    %257 = arith.addf %255, %256 : vector<2x32xf32>
    %258 = math.tanh %257 : vector<2x32xf32>
    %259 = arith.mulf %254, %258 : vector<2x32xf32>
    %260 = tpu.concatenate %259, %240 in 1 : vector<2x32xf32>, vector<2x32xf32> -> vector<2x64xf32>
    %cst_38 = arith.constant dense<0.000000e+00> : vector<2x128xf32>
    %261 = tpu.matmul %260, %1, %cst_38 {dimension_numbers = #tpu.dot_dimension_numbers<[1], [0], [0], [1], [0, 0, 1, 1], [], []>} : vector<2x64xf32>, vector<64x128xf32>, vector<2x128xf32> -> vector<2x128xf32>
    %262 = arith.addf %261, %11 : vector<2x128xf32>
    %263 = vector.extract_strided_slice %262 {offsets = [0, 0], sizes = [2, 96], strides = [1, 1]} : vector<2x128xf32> to vector<2x96xf32>
    %264 = arith.negf %263 : vector<2x96xf32>
    %265 = math.exp %264 : vector<2x96xf32>
    %cst_39 = arith.constant 1.000000e+00 : f32
    %266 = vector.broadcast %cst_39 : f32 to vector<2x96xf32>
    %267 = arith.addf %266, %265 : vector<2x96xf32>
    %268 = arith.divf %266, %267 : vector<2x96xf32>
    %269 = vector.extract_strided_slice %262 {offsets = [0, 96], sizes = [2, 32], strides = [1, 1]} : vector<2x128xf32> to vector<2x32xf32>
    %270 = math.tanh %269 : vector<2x32xf32>
    %271 = vector.extract_strided_slice %268 {offsets = [0, 0], sizes = [2, 32], strides = [1, 1]} : vector<2x96xf32> to vector<2x32xf32>
    %272 = vector.extract_strided_slice %268 {offsets = [0, 32], sizes = [2, 32], strides = [1, 1]} : vector<2x96xf32> to vector<2x32xf32>
    %273 = vector.extract_strided_slice %268 {offsets = [0, 64], sizes = [2, 32], strides = [1, 1]} : vector<2x96xf32> to vector<2x32xf32>
    %274 = arith.mulf %272, %238 : vector<2x32xf32>
    %275 = arith.mulf %271, %270 : vector<2x32xf32>
    %276 = arith.addf %274, %275 : vector<2x32xf32>
    %277 = math.tanh %276 : vector<2x32xf32>
    %278 = arith.mulf %273, %277 : vector<2x32xf32>
    %279 = vector.extract_strided_slice %8 {offsets = [14, 0], sizes = [2, 128], strides = [1, 1]} : vector<16x128xf32> to vector<2x128xf32>
    %cst_40 = arith.constant dense<0.000000e+00> : vector<2x128xf32>
    %280 = tpu.matmul %259, %0, %cst_40 {dimension_numbers = #tpu.dot_dimension_numbers<[1], [0], [0], [1], [0, 0, 1, 1], [], []>} : vector<2x32xf32>, vector<32x128xf32>, vector<2x128xf32> -> vector<2x128xf32>
    %281 = arith.addf %279, %280 : vector<2x128xf32>
    %282 = vector.extract_strided_slice %281 {offsets = [0, 0], sizes = [2, 96], strides = [1, 1]} : vector<2x128xf32> to vector<2x96xf32>
    %283 = arith.negf %282 : vector<2x96xf32>
    %284 = math.exp %283 : vector<2x96xf32>
    %cst_41 = arith.constant 1.000000e+00 : f32
    %285 = vector.broadcast %cst_41 : f32 to vector<2x96xf32>
    %286 = arith.addf %285, %284 : vector<2x96xf32>
    %287 = arith.divf %285, %286 : vector<2x96xf32>
    %288 = vector.extract_strided_slice %281 {offsets = [0, 96], sizes = [2, 32], strides = [1, 1]} : vector<2x128xf32> to vector<2x32xf32>
    %289 = math.tanh %288 : vector<2x32xf32>
    %290 = vector.extract_strided_slice %287 {offsets = [0, 0], sizes = [2, 32], strides = [1, 1]} : vector<2x96xf32> to vector<2x32xf32>
    %291 = vector.extract_strided_slice %287 {offsets = [0, 32], sizes = [2, 32], strides = [1, 1]} : vector<2x96xf32> to vector<2x32xf32>
    %292 = vector.extract_strided_slice %287 {offsets = [0, 64], sizes = [2, 32], strides = [1, 1]} : vector<2x96xf32> to vector<2x32xf32>
    %293 = arith.mulf %291, %257 : vector<2x32xf32>
    %294 = arith.mulf %290, %289 : vector<2x32xf32>
    %295 = arith.addf %293, %294 : vector<2x32xf32>
    %296 = math.tanh %295 : vector<2x32xf32>
    %297 = arith.mulf %292, %296 : vector<2x32xf32>
    %298 = tpu.concatenate %297, %278 in 1 : vector<2x32xf32>, vector<2x32xf32> -> vector<2x64xf32>
    %cst_42 = arith.constant dense<0.000000e+00> : vector<2x128xf32>
    %299 = tpu.matmul %298, %1, %cst_42 {dimension_numbers = #tpu.dot_dimension_numbers<[1], [0], [0], [1], [0, 0, 1, 1], [], []>} : vector<2x64xf32>, vector<64x128xf32>, vector<2x128xf32> -> vector<2x128xf32>
    %300 = arith.addf %299, %11 : vector<2x128xf32>
    %301 = vector.extract_strided_slice %300 {offsets = [0, 0], sizes = [2, 96], strides = [1, 1]} : vector<2x128xf32> to vector<2x96xf32>
    %302 = arith.negf %301 : vector<2x96xf32>
    %303 = math.exp %302 : vector<2x96xf32>
    %cst_43 = arith.constant 1.000000e+00 : f32
    %304 = vector.broadcast %cst_43 : f32 to vector<2x96xf32>
    %305 = arith.addf %304, %303 : vector<2x96xf32>
    %306 = arith.divf %304, %305 : vector<2x96xf32>
    %307 = vector.extract_strided_slice %300 {offsets = [0, 96], sizes = [2, 32], strides = [1, 1]} : vector<2x128xf32> to vector<2x32xf32>
    %308 = math.tanh %307 : vector<2x32xf32>
    %309 = vector.extract_strided_slice %306 {offsets = [0, 0], sizes = [2, 32], strides = [1, 1]} : vector<2x96xf32> to vector<2x32xf32>
    %310 = vector.extract_strided_slice %306 {offsets = [0, 32], sizes = [2, 32], strides = [1, 1]} : vector<2x96xf32> to vector<2x32xf32>
    %311 = vector.extract_strided_slice %306 {offsets = [0, 64], sizes = [2, 32], strides = [1, 1]} : vector<2x96xf32> to vector<2x32xf32>
    %312 = arith.mulf %310, %276 : vector<2x32xf32>
    %313 = arith.mulf %309, %308 : vector<2x32xf32>
    %314 = arith.addf %312, %313 : vector<2x32xf32>
    %315 = math.tanh %314 : vector<2x32xf32>
    %316 = arith.mulf %311, %315 : vector<2x32xf32>
    %c0_44 = arith.constant 0 : index
    %c0_45 = arith.constant 0 : index
    %317 = vector.load %arg6[%c0_44, %c0_45] : memref<32x8xf32, #tpu.memory_space<vmem>>, vector<32x8xf32>
    %cst_46 = arith.constant dense<0.000000e+00> : vector<2x8xf32>
    %318 = tpu.matmul %316, %317, %cst_46 {dimension_numbers = #tpu.dot_dimension_numbers<[1], [0], [0], [1], [0, 0, 1, 1], [], []>} : vector<2x32xf32>, vector<32x8xf32>, vector<2x8xf32> -> vector<2x8xf32>
    %c0_47 = arith.constant 0 : index
    %c0_48 = arith.constant 0 : index
    %319 = vector.load %arg7[%c0_47, %c0_48] : memref<1x8xf32, #tpu.memory_space<vmem>>, vector<1x8xf32>
    %320 = vector.broadcast %319 : vector<1x8xf32> to vector<2x8xf32>
    %321 = arith.addf %318, %320 : vector<2x8xf32>
    %c0_49 = arith.constant 0 : index
    %c0_50 = arith.constant 0 : index
    %322 = vector.load %arg8[%c0_49, %c0_50] : memref<2x8xf32, #tpu.memory_space<vmem>>, vector<2x8xf32>
    tpu.vector_store %arg8[%c0_49, %c0_50], %321 {strides = array<i32>} : memref<2x8xf32, #tpu.memory_space<vmem>>, vector<2x8xf32>,
    return
  }
}

</mosaic_0001>

<llo_original>
// kernel: question_type_forward.1
$region0: #{question_type_forward.1}
  #allocation0 [shape = 'u32[]', space=smem, size = 0x4, offset = 0x4, fixed_abs, tag = 'smem constant byte address 0x4 - core index']
  #allocation1 [shape = 'u32[72,128]{1,0:T(1,128)}', space=vmem, size = 0x9000, scoped, tag = 'internal scratch']
  %s0 = inlined_call_operand.vmem [shape: f32[16,16], index: 0, kind: input, shape index: {}]
  %s1 = inlined_call_operand.hbm [shape: f32[16,128], index: 1, kind: input, shape index: {}]
  %s2 = inlined_call_operand.hbm [shape: f32[32,128], index: 2, kind: input, shape index: {}]
  %s3 = inlined_call_operand.vmem [shape: f32[1,128], index: 3, kind: input, shape index: {}]
  %s4 = inlined_call_operand.vmem [shape: f32[64,128], index: 4, kind: input, shape index: {}]
  %s5 = inlined_call_operand.vmem [shape: f32[1,128], index: 5, kind: input, shape index: {}]
  %s6 = inlined_call_operand.vmem [shape: f32[32,8], index: 6, kind: input, shape index: {}]
  %s7 = inlined_call_operand.vmem [shape: f32[1,8], index: 7, kind: input, shape index: {}]
  %s8 = inlined_call_operand.hbm [shape: f32[2,8], index: 8, kind: output, shape index: {}]
  %s9 = sld [smem:[#allocation0]]
  $region50: #{question_type_forward.1} parent=0
    _
  %s11 = ssub.s32 1, %s9
  %s12 = scalar_select 0, %s11, %s9
  $region1: #{question_type_forward.1} parent=0
    #allocation2 [shape = 'u8[8192]{0}', space=vmem, size = 0x2000, scoped, tag = 'input window, operand 1, single buffered']
    #allocation3 [shape = 's32[1]{0}', space=sflag, size = 0x4, scoped, tag = 'scoped memory for question_type_forward.1']
    #allocation4 [shape = 's32[1]{0}', space=sflag, size = 0x4, scoped, tag = 'scoped memory for question_type_forward.1']
    #allocation5 [shape = 'u8[16384]{0}', space=vmem, size = 0x4000, scoped, tag = 'input window, operand 2, single buffered']
    #allocation6 [shape = 's32[1]{0}', space=sflag, size = 0x4, scoped, tag = 'scoped memory for question_type_forward.1']
    #allocation7 [shape = 'u8[1024]{0}', space=vmem, size = 0x400, scoped, tag = 'output window, operand 0, single buffered']
    %13 = vsyncpa [#allocation3], 0
    %14 = vsyncpa [#allocation6], 0
    %15 = vsyncpa [#allocation4], 0
    // Predicated region
    $region2: #{question_type_forward.1} parent=1 // pred_check
      _
    $region3: #{question_type_forward.1} parent=1 // pred_check_branch
      %17 = sbr.rel (0) target = $region5
    $region4: #{question_type_forward.1} parent=1 // pred_region
      _
    $region5: #{question_type_forward.1} parent=1 // pred_fallthru
      _
    // Predicated region
    $region6: #{question_type_forward.1} parent=1 // pred_check
      _
    $region7: #{question_type_forward.1} parent=1 // pred_check_branch
      %19 = sbr.rel (0) target = $region9
    $region8: #{question_type_forward.1} parent=1 // pred_region
      %21 = vsyncadd [#allocation3], 0
      %s22 = sshll.u32 %s1, 4
      %s23 = int_to_ptr.hbm [resolvable:$true] %s22
      %s24 = sshll.u32 [#allocation2], 4
      %s25 = int_to_ptr.vmem [resolvable:$true] %s24
      %30 = dma.hbm_to_vmem [thread:$0]  %s23, 256, %s25, [#allocation3], 128, 128, 8
    $region9: #{question_type_forward.1} parent=1 // pred_fallthru
      _
    // Predicated region
    $region10: #{question_type_forward.1} parent=1 // pred_check
      _
    $region11: #{question_type_forward.1} parent=1 // pred_check_branch
      %32 = sbr.rel (0) target = $region13
    $region12: #{question_type_forward.1} parent=1 // pred_region
      %34 = vsyncadd [#allocation6], 0
      %s35 = sshll.u32 %s2, 4
      %s36 = int_to_ptr.hbm [resolvable:$true] %s35
      %s37 = sshll.u32 [#allocation5], 4
      %s38 = int_to_ptr.vmem [resolvable:$true] %s37
      %43 = dma.hbm_to_vmem [thread:$0]  %s36, 512, %s38, [#allocation6], 128, 128, 8
    $region13: #{question_type_forward.1} parent=1 // pred_fallthru
      _
    // Predicated region
    $region14: #{question_type_forward.1} parent=1 // pred_check
      _
    $region15: #{question_type_forward.1} parent=1 // pred_check_branch
      %45 = sbr.rel (0) target = $region17
    $region16: #{question_type_forward.1} parent=1 // pred_region
      _
    $region17: #{question_type_forward.1} parent=1 // pred_fallthru
      _
    // Predicated region
    $region18: #{question_type_forward.1} parent=1 // pred_check
      _
    $region19: #{question_type_forward.1} parent=1 // pred_check_branch
      %47 = sbr.rel (0) target = $region21
    $region20: #{question_type_forward.1} parent=1 // pred_region
      _
    $region21: #{question_type_forward.1} parent=1 // pred_fallthru
      _
    // Predicated region
    $region22: #{question_type_forward.1} parent=1 // pred_check
      _
    $region23: #{question_type_forward.1} parent=1 // pred_check_branch
      %49 = sbr.rel (0) target = $region25
    $region24: #{question_type_forward.1} parent=1 // pred_region
      _
    $region25: #{question_type_forward.1} parent=1 // pred_fallthru
      _
    // Predicated region
    $region26: #{question_type_forward.1} parent=1 // pred_check
      _
    $region27: #{question_type_forward.1} parent=1 // pred_check_branch
      %51 = sbr.rel (0) target = $region29
    $region28: #{question_type_forward.1} parent=1 // pred_region
      _
    $region29: #{question_type_forward.1} parent=1 // pred_fallthru
      _
    // Predicated region
    $region30: #{question_type_forward.1} parent=1 // pred_check
      _
    $region31: #{question_type_forward.1} parent=1 // pred_check_branch
      %53 = sbr.rel (0) target = $region33
    $region32: #{question_type_forward.1} parent=1 // pred_region
      _
    $region33: #{question_type_forward.1} parent=1 // pred_fallthru
      _
    // Predicated region
    $region34: #{question_type_forward.1} parent=1 // pred_check
      _
    $region35: #{question_type_forward.1} parent=1 // pred_check_branch
      %55 = sbr.rel (0) target = $region37
    $region36: #{question_type_forward.1} parent=1 // pred_region
      %57 = dma.done [#allocation3], 256
    $region37: #{question_type_forward.1} parent=1 // pred_fallthru
      _
    // Predicated region
    $region38: #{question_type_forward.1} parent=1 // pred_check
      _
    $region39: #{question_type_forward.1} parent=1 // pred_check_branch
      %59 = sbr.rel (0) target = $region41
    $region40: #{question_type_forward.1} parent=1 // pred_region
      %61 = dma.done [#allocation6], 512
    $region41: #{question_type_forward.1} parent=1 // pred_fallthru
      _
    %v62 = vld [vmem:[#allocation5] sm:$0xff]
    %v63 = vld [vmem:[#allocation5 + $0x8] sm:$0xff]
    %v64 = vld [vmem:[#allocation5 + $0x10] sm:$0xff]
    %v65 = vld [vmem:[#allocation5 + $0x18] sm:$0xff]
    %v66 = vld [vmem:[%s4] sm:$0xff]
    %v67 = vld [vmem:[%s4 + $0x8] sm:$0xff]
    %v68 = vld [vmem:[%s4 + $0x10] sm:$0xff]
    %v69 = vld [vmem:[%s4 + $0x18] sm:$0xff]
    %v70 = vld [vmem:[%s4 + $0x20] sm:$0xff]
    %v71 = vld [vmem:[%s4 + $0x28] sm:$0xff]
    %v72 = vld [vmem:[%s4 + $0x30] sm:$0xff]
    %v73 = vld [vmem:[%s4 + $0x38] sm:$0xff]
    %v74 = vld [vmem:[%s0] sm:$0xff]
    %v75 = vld [vmem:[%s0 + $0x8] sm:$0xff]
    %v76 = vld [vmem:[#allocation2] sm:$0xff]
    %v77 = vld [vmem:[#allocation2 + $0x8] sm:$0xff]
    %v78 = vld [vmem:[%s3] sm:$0x1]
    %v80 = vperm.slane %v78, 0
    %vm82 = vcmask 130048
    %v84 = vsel %vm82, %v74, 0
    %v87 = vsel %vm82, %v75, 0
    %89 = vmatpush.msra.mxu0 0.0
    %90 = vmatpush.msra.mxu0 0.0
    %91 = vmatpush.msra.mxu0 0.0
    %92 = vmatpush.msra.mxu0 0.0
    %93 = vmatpush.msra.mxu0 0.0
    %94 = vmatpush.msra.mxu0 0.0
    %95 = vmatpush.msra.mxu0 0.0
    %96 = vmatpush.msra.mxu0 0.0
    %97 = vmatpush.msra.mxu0 0.0
    %98 = vmatpush.msra.mxu0 0.0
    %99 = vmatpush.msra.mxu0 0.0
    %100 = vmatpush.msra.mxu0 0.0
    %101 = vmatpush.msra.mxu0 0.0
    %102 = vmatpush.msra.mxu0 0.0
    %103 = vmatpush.msra.mxu0 %v77
    %104 = vmatpush.msra.mxu0 %v76
    %105 = vmatmul.f32.gmra.mxu0 %v84
    %v106 = vpop.f32.mrf.mxu0
    %v107 = vadd.f32 %v80, %v106
    %108 = vmatmul.f32.gmra.mxu0 %v87
    %v109 = vpop.f32.mrf.mxu0
    %v110 = vadd.f32 %v80, %v109
    %111 = vdwg.mxu0
    %v112 = vld [vmem:[%s5] sm:$0x1]
    %v114 = vperm.slane %v112, 0
    %vm116 = vcmask 261120
    %v118 = vsel %vm116, 0.0, 0
    %120 = vmatpush.msra.mxu0 0.0
    %121 = vmatpush.msra.mxu0 0.0
    %122 = vmatpush.msra.mxu0 0.0
    %123 = vmatpush.msra.mxu0 0.0
    %124 = vmatpush.msra.mxu0 0.0
    %125 = vmatpush.msra.mxu0 0.0
    %126 = vmatpush.msra.mxu0 0.0
    %127 = vmatpush.msra.mxu0 0.0
    %128 = vmatpush.msra.mxu0 0.0
    %129 = vmatpush.msra.mxu0 0.0
    %130 = vmatpush.msra.mxu0 0.0
    %131 = vmatpush.msra.mxu0 0.0
    %132 = vmatpush.msra.mxu0 %v65
    %133 = vmatpush.msra.mxu0 %v64
    %134 = vmatpush.msra.mxu0 %v63
    %135 = vmatpush.msra.mxu0 %v62
    %136 = vmatmul.f32.gmra.mxu0 %v118
    %v137 = vpop.f32.mrf.mxu0
    %v138 = vadd.f32 0.0, %v137
    %139 = vdwg.mxu0
    %v140 = vadd.f32 %v107, %v138
    %v141 = vxor.u32 %v140, 2147483648
    %v142 = vmul.f32 %v141, 1.442695
    %v143 = vpow.pop %v142
    %v144 = vadd.f32 %v143, 1.0
    %v145 = vrcp.pop %v144
    %v146 = vmul.f32 %v144, %v145
    %v147 = vsub.f32 1.0, %v146
    %v148 = vmul.f32 %v145, %v147
    %v149 = vadd.f32 %v145, %v148
    %vm150 = vweird.f32 %v144
    %vm151 = vweird.f32 %v145
    %vm152 = vmor %vm150, %vm151
    %v153 = vsel %vm152, %v145, %v149
    %v154 = vand.u32 2147483647, %v144
    %vm155 = vcmp.eq.f32.partialorder %v154, 8.507059e+37
    %v156 = vand.u32 %v144, 2147483648
    %v157 = vor.u32 1.1754944e-38, %v156
    %v158 = vsel %vm155, %v157, %v153
    %v159 = vmul.f32 1.0, %v158
    %v160 = vtanh.pop %v140
    %v161 = vmul.f32 %v159, 0.0
    %163 = vrot.lane.b32.xlu0 %v160, 32
    %v164 = vpop.permute.xlu0 %163
    %v166 = vmul.f32 %v159, %v164
    %168 = vrot.lane.b32.xlu0 %v166, 32
    %v169 = vpop.permute.xlu0 %168
    %v171 = vadd.f32 %v161, %v169
    %v172 = vtanh.pop %v171
    %174 = vrot.lane.b32.xlu0 %v172, 32
    %v175 = vpop.permute.xlu0 %174
    %v177 = vmul.f32 %v159, %v175
    %179 = vrot.lane.b32.xlu0 %v177, 64
    %v180 = vpop.permute.xlu0 %179
    %v182 = vsel %vm116, %v180, 0.0
    %vm183 = vcmask 523264
    %v185 = vsel %vm183, %v182, 0
    %187 = vmatpush.msra.mxu0 0.0
    %188 = vmatpush.msra.mxu0 0.0
    %189 = vmatpush.msra.mxu0 0.0
    %190 = vmatpush.msra.mxu0 0.0
    %191 = vmatpush.msra.mxu0 0.0
    %192 = vmatpush.msra.mxu0 0.0
    %193 = vmatpush.msra.mxu0 0.0
    %194 = vmatpush.msra.mxu0 0.0
    %195 = vmatpush.msra.mxu0 %v73
    %196 = vmatpush.msra.mxu0 %v72
    %197 = vmatpush.msra.mxu0 %v71
    %198 = vmatpush.msra.mxu0 %v70
    %199 = vmatpush.msra.mxu0 %v69
    %200 = vmatpush.msra.mxu0 %v68
    %201 = vmatpush.msra.mxu0 %v67
    %202 = vmatpush.msra.mxu0 %v66
    %203 = vmatmul.f32.gmra.mxu0 %v185
    %v204 = vpop.f32.mrf.mxu0
    %v205 = vadd.f32 %v114, %v204
    %206 = vdwg.mxu0
    %v207 = vxor.u32 %v205, 2147483648
    %v208 = vmul.f32 %v207, 1.442695
    %v209 = vpow.pop %v208
    %v210 = vadd.f32 %v209, 1.0
    %v211 = vrcp.pop %v210
    %v212 = vmul.f32 %v210, %v211
    %v213 = vsub.f32 1.0, %v212
    %v214 = vmul.f32 %v211, %v213
    %v215 = vadd.f32 %v211, %v214
    %vm216 = vweird.f32 %v210
    %vm217 = vweird.f32 %v211
    %vm218 = vmor %vm216, %vm217
    %v219 = vsel %vm218, %v211, %v215
    %v220 = vand.u32 2147483647, %v210
    %vm221 = vcmp.eq.f32.partialorder %v220, 8.507059e+37
    %v222 = vand.u32 %v210, 2147483648
    %v223 = vor.u32 1.1754944e-38, %v222
    %v224 = vsel %vm221, %v223, %v219
    %v225 = vmul.f32 1.0, %v224
    %v226 = vtanh.pop %v205
    %v227 = vmul.f32 %v225, 0.0
    %229 = vrot.lane.b32.xlu0 %v226, 32
    %v230 = vpop.permute.xlu0 %229
    %v232 = vmul.f32 %v225, %v230
    %234 = vrot.lane.b32.xlu0 %v232, 32
    %v235 = vpop.permute.xlu0 %234
    %v237 = vadd.f32 %v227, %v235
    %v238 = vtanh.pop %v237
    %240 = vrot.lane.b32.xlu0 %v238, 32
    %v241 = vpop.permute.xlu0 %240
    %v243 = vmul.f32 %v225, %v241
    %v244 = vsel %vm116, %v180, 0
    %246 = vmatpush.msra.mxu0 0.0
    %247 = vmatpush.msra.mxu0 0.0
    %248 = vmatpush.msra.mxu0 0.0
    %249 = vmatpush.msra.mxu0 0.0
    %250 = vmatpush.msra.mxu0 0.0
    %251 = vmatpush.msra.mxu0 0.0
    %252 = vmatpush.msra.mxu0 0.0
    %253 = vmatpush.msra.mxu0 0.0
    %254 = vmatpush.msra.mxu0 0.0
    %255 = vmatpush.msra.mxu0 0.0
    %256 = vmatpush.msra.mxu0 0.0
    %257 = vmatpush.msra.mxu0 0.0
    %258 = vmatpush.msra.mxu0 %v65
    %259 = vmatpush.msra.mxu0 %v64
    %260 = vmatpush.msra.mxu0 %v63
    %261 = vmatpush.msra.mxu0 %v62
    %262 = vmatmul.f32.gmra.mxu0 %v244
    %v263 = vpop.f32.mrf.mxu0
    %v264 = vadd.f32 0.0, %v263
    %265 = vdwg.mxu0
    %v267 = vrot.slane %v264, 6
    %v269 = vadd.f32 %v107, %v267
    %v270 = vxor.u32 %v269, 2147483648
    %v271 = vmul.f32 %v270, 1.442695
    %v272 = vpow.pop %v271
    %v273 = vadd.f32 %v272, 1.0
    %v274 = vrcp.pop %v273
    %v275 = vmul.f32 %v273, %v274
    %v276 = vsub.f32 1.0, %v275
    %v277 = vmul.f32 %v274, %v276
    %v278 = vadd.f32 %v274, %v277
    %vm279 = vweird.f32 %v273
    %vm280 = vweird.f32 %v274
    %vm281 = vmor %vm279, %vm280
    %v282 = vsel %vm281, %v274, %v278
    %v283 = vand.u32 2147483647, %v273
    %vm284 = vcmp.eq.f32.partialorder %v283, 8.507059e+37
    %v285 = vand.u32 %v273, 2147483648
    %v286 = vor.u32 1.1754944e-38, %v285
    %v287 = vsel %vm284, %v286, %v282
    %v288 = vmul.f32 1.0, %v287
    %v289 = vtanh.pop %v269
    %v291 = vrot.slane %v171, 6
    %v293 = vmul.f32 %v288, %v291
    %295 = vrot.lane.b32.xlu0 %v289, 32
    %v296 = vpop.permute.xlu0 %295
    %v298 = vmul.f32 %v288, %v296
    %300 = vrot.lane.b32.xlu0 %v298, 32
    %v301 = vpop.permute.xlu0 %300
    %v303 = vadd.f32 %v293, %v301
    %v304 = vtanh.pop %v303
    %306 = vrot.lane.b32.xlu0 %v304, 32
    %v307 = vpop.permute.xlu0 %306
    %v309 = vmul.f32 %v288, %v307
    %311 = vrot.lane.b32.xlu0 %v309, 64
    %v312 = vpop.permute.xlu0 %311
    %v315 = vrot.slane %v243, 6
    %316 = vrot.lane.b32.xlu0 %v315, 96
    %v317 = vpop.permute.xlu0 %316
    %v319 = vsel %vm116, %v312, %v317
    %v321 = vrot.slane %v319, 2
    %v322 = vsel %vm183, %v321, 0
    %324 = vmatpush.msra.mxu0 0.0
    %325 = vmatpush.msra.mxu0 0.0
    %326 = vmatpush.msra.mxu0 0.0
    %327 = vmatpush.msra.mxu0 0.0
    %328 = vmatpush.msra.mxu0 0.0
    %329 = vmatpush.msra.mxu0 0.0
    %330 = vmatpush.msra.mxu0 0.0
    %331 = vmatpush.msra.mxu0 0.0
    %332 = vmatpush.msra.mxu0 %v73
    %333 = vmatpush.msra.mxu0 %v72
    %334 = vmatpush.msra.mxu0 %v71
    %335 = vmatpush.msra.mxu0 %v70
    %336 = vmatpush.msra.mxu0 %v69
    %337 = vmatpush.msra.mxu0 %v68
    %338 = vmatpush.msra.mxu0 %v67
    %339 = vmatpush.msra.mxu0 %v66
    %340 = vmatmul.f32.gmra.mxu0 %v322
    %v341 = vpop.f32.mrf.mxu0
    %v342 = vadd.f32 %v114, %v341
    %343 = vdwg.mxu0
    %v344 = vxor.u32 %v342, 2147483648
    %v345 = vmul.f32 %v344, 1.442695
    %v346 = vpow.pop %v345
    %v347 = vadd.f32 %v346, 1.0
    %v348 = vrcp.pop %v347
    %v349 = vmul.f32 %v347, %v348
    %v350 = vsub.f32 1.0, %v349
    %v351 = vmul.f32 %v348, %v350
    %v352 = vadd.f32 %v348, %v351
    %vm353 = vweird.f32 %v347
    %vm354 = vweird.f32 %v348
    %vm355 = vmor %vm353, %vm354
    %v356 = vsel %vm355, %v348, %v352
    %v357 = vand.u32 2147483647, %v347
    %vm358 = vcmp.eq.f32.partialorder %v357, 8.507059e+37
    %v359 = vand.u32 %v347, 2147483648
    %v360 = vor.u32 1.1754944e-38, %v359
    %v361 = vsel %vm358, %v360, %v356
    %v362 = vmul.f32 1.0, %v361
    %v363 = vtanh.pop %v342
    %v364 = vmul.f32 %v362, %v237
    %366 = vrot.lane.b32.xlu0 %v363, 32
    %v367 = vpop.permute.xlu0 %366
    %v369 = vmul.f32 %v362, %v367
    %371 = vrot.lane.b32.xlu0 %v369, 32
    %v372 = vpop.permute.xlu0 %371
    %v374 = vadd.f32 %v364, %v372
    %v375 = vtanh.pop %v374
    %377 = vrot.lane.b32.xlu0 %v375, 32
    %v378 = vpop.permute.xlu0 %377
    %v380 = vmul.f32 %v362, %v378
    %v381 = vrot.slane %v309, 2
    %382 = vrot.lane.b32.xlu0 %v381, 64
    %v383 = vpop.permute.xlu0 %382
    %v384 = vsel %vm116, %v383, 0
    %386 = vmatpush.msra.mxu0 0.0
    %387 = vmatpush.msra.mxu0 0.0
    %388 = vmatpush.msra.mxu0 0.0
    %389 = vmatpush.msra.mxu0 0.0
    %390 = vmatpush.msra.mxu0 0.0
    %391 = vmatpush.msra.mxu0 0.0
    %392 = vmatpush.msra.mxu0 0.0
    %393 = vmatpush.msra.mxu0 0.0
    %394 = vmatpush.msra.mxu0 0.0
    %395 = vmatpush.msra.mxu0 0.0
    %396 = vmatpush.msra.mxu0 0.0
    %397 = vmatpush.msra.mxu0 0.0
    %398 = vmatpush.msra.mxu0 %v65
    %399 = vmatpush.msra.mxu0 %v64
    %400 = vmatpush.msra.mxu0 %v63
    %401 = vmatpush.msra.mxu0 %v62
    %402 = vmatmul.f32.gmra.mxu0 %v384
    %v403 = vpop.f32.mrf.mxu0
    %v404 = vadd.f32 0.0, %v403
    %405 = vdwg.mxu0
    %v407 = vrot.slane %v404, 4
    %v409 = vadd.f32 %v107, %v407
    %v410 = vxor.u32 %v409, 2147483648
    %v411 = vmul.f32 %v410, 1.442695
    %v412 = vpow.pop %v411
    %v413 = vadd.f32 %v412, 1.0
    %v414 = vrcp.pop %v413
    %v415 = vmul.f32 %v413, %v414
    %v416 = vsub.f32 1.0, %v415
    %v417 = vmul.f32 %v414, %v416
    %v418 = vadd.f32 %v414, %v417
    %vm419 = vweird.f32 %v413
    %vm420 = vweird.f32 %v414
    %vm421 = vmor %vm419, %vm420
    %v422 = vsel %vm421, %v414, %v418
    %v423 = vand.u32 2147483647, %v413
    %vm424 = vcmp.eq.f32.partialorder %v423, 8.507059e+37
    %v425 = vand.u32 %v413, 2147483648
    %v426 = vor.u32 1.1754944e-38, %v425
    %v427 = vsel %vm424, %v426, %v422
    %v428 = vmul.f32 1.0, %v427
    %v429 = vtanh.pop %v409
    %v431 = vrot.slane %v303, 6
    %v433 = vmul.f32 %v428, %v431
    %435 = vrot.lane.b32.xlu0 %v429, 32
    %v436 = vpop.permute.xlu0 %435
    %v438 = vmul.f32 %v428, %v436
    %440 = vrot.lane.b32.xlu0 %v438, 32
    %v441 = vpop.permute.xlu0 %440
    %v443 = vadd.f32 %v433, %v441
    %v444 = vtanh.pop %v443
    %446 = vrot.lane.b32.xlu0 %v444, 32
    %v447 = vpop.permute.xlu0 %446
    %v449 = vmul.f32 %v428, %v447
    %451 = vrot.lane.b32.xlu0 %v449, 64
    %v452 = vpop.permute.xlu0 %451
    %v455 = vrot.slane %v380, 4
    %456 = vrot.lane.b32.xlu0 %v455, 96
    %v457 = vpop.permute.xlu0 %456
    %v459 = vsel %vm116, %v452, %v457
    %v461 = vrot.slane %v459, 4
    %v462 = vsel %vm183, %v461, 0
    %464 = vmatpush.msra.mxu0 0.0
    %465 = vmatpush.msra.mxu0 0.0
    %466 = vmatpush.msra.mxu0 0.0
    %467 = vmatpush.msra.mxu0 0.0
    %468 = vmatpush.msra.mxu0 0.0
    %469 = vmatpush.msra.mxu0 0.0
    %470 = vmatpush.msra.mxu0 0.0
    %471 = vmatpush.msra.mxu0 0.0
    %472 = vmatpush.msra.mxu0 %v73
    %473 = vmatpush.msra.mxu0 %v72
    %474 = vmatpush.msra.mxu0 %v71
    %475 = vmatpush.msra.mxu0 %v70
    %476 = vmatpush.msra.mxu0 %v69
    %477 = vmatpush.msra.mxu0 %v68
    %478 = vmatpush.msra.mxu0 %v67
    %479 = vmatpush.msra.mxu0 %v66
    %480 = vmatmul.f32.gmra.mxu0 %v462
    %v481 = vpop.f32.mrf.mxu0
    %v482 = vadd.f32 %v114, %v481
    %483 = vdwg.mxu0
    %v484 = vxor.u32 %v482, 2147483648
    %v485 = vmul.f32 %v484, 1.442695
    %v486 = vpow.pop %v485
    %v487 = vadd.f32 %v486, 1.0
    %v488 = vrcp.pop %v487
    %v489 = vmul.f32 %v487, %v488
    %v490 = vsub.f32 1.0, %v489
    %v491 = vmul.f32 %v488, %v490
    %v492 = vadd.f32 %v488, %v491
    %vm493 = vweird.f32 %v487
    %vm494 = vweird.f32 %v488
    %vm495 = vmor %vm493, %vm494
    %v496 = vsel %vm495, %v488, %v492
    %v497 = vand.u32 2147483647, %v487
    %vm498 = vcmp.eq.f32.partialorder %v497, 8.507059e+37
    %v499 = vand.u32 %v487, 2147483648
    %v500 = vor.u32 1.1754944e-38, %v499
    %v501 = vsel %vm498, %v500, %v496
    %v502 = vmul.f32 1.0, %v501
    %v503 = vtanh.pop %v482
    %v504 = vmul.f32 %v502, %v374
    %506 = vrot.lane.b32.xlu0 %v503, 32
    %v507 = vpop.permute.xlu0 %506
    %v509 = vmul.f32 %v502, %v507
    %511 = vrot.lane.b32.xlu0 %v509, 32
    %v512 = vpop.permute.xlu0 %511
    %v514 = vadd.f32 %v504, %v512
    %v515 = vtanh.pop %v514
    %517 = vrot.lane.b32.xlu0 %v515, 32
    %v518 = vpop.permute.xlu0 %517
    %v520 = vmul.f32 %v502, %v518
    %v521 = vrot.slane %v449, 4
    %522 = vrot.lane.b32.xlu0 %v521, 64
    %v523 = vpop.permute.xlu0 %522
    %v524 = vsel %vm116, %v523, 0
    %526 = vmatpush.msra.mxu0 0.0
    %527 = vmatpush.msra.mxu0 0.0
    %528 = vmatpush.msra.mxu0 0.0
    %529 = vmatpush.msra.mxu0 0.0
    %530 = vmatpush.msra.mxu0 0.0
    %531 = vmatpush.msra.mxu0 0.0
    %532 = vmatpush.msra.mxu0 0.0
    %533 = vmatpush.msra.mxu0 0.0
    %534 = vmatpush.msra.mxu0 0.0
    %535 = vmatpush.msra.mxu0 0.0
    %536 = vmatpush.msra.mxu0 0.0
    %537 = vmatpush.msra.mxu0 0.0
    %538 = vmatpush.msra.mxu0 %v65
    %539 = vmatpush.msra.mxu0 %v64
    %540 = vmatpush.msra.mxu0 %v63
    %541 = vmatpush.msra.mxu0 %v62
    %542 = vmatmul.f32.gmra.mxu0 %v524
    %v543 = vpop.f32.mrf.mxu0
    %v544 = vadd.f32 0.0, %v543
    %545 = vdwg.mxu0
    %v547 = vrot.slane %v544, 2
    %v549 = vadd.f32 %v107, %v547
    %v550 = vxor.u32 %v549, 2147483648
    %v551 = vmul.f32 %v550, 1.442695
    %v552 = vpow.pop %v551
    %v553 = vadd.f32 %v552, 1.0
    %v554 = vrcp.pop %v553
    %v555 = vmul.f32 %v553, %v554
    %v556 = vsub.f32 1.0, %v555
    %v557 = vmul.f32 %v554, %v556
    %v558 = vadd.f32 %v554, %v557
    %vm559 = vweird.f32 %v553
    %vm560 = vweird.f32 %v554
    %vm561 = vmor %vm559, %vm560
    %v562 = vsel %vm561, %v554, %v558
    %v563 = vand.u32 2147483647, %v553
    %vm564 = vcmp.eq.f32.partialorder %v563, 8.507059e+37
    %v565 = vand.u32 %v553, 2147483648
    %v566 = vor.u32 1.1754944e-38, %v565
    %v567 = vsel %vm564, %v566, %v562
    %v568 = vmul.f32 1.0, %v567
    %v569 = vtanh.pop %v549
    %v571 = vrot.slane %v443, 6
    %v573 = vmul.f32 %v568, %v571
    %575 = vrot.lane.b32.xlu0 %v569, 32
    %v576 = vpop.permute.xlu0 %575
    %v578 = vmul.f32 %v568, %v576
    %580 = vrot.lane.b32.xlu0 %v578, 32
    %v581 = vpop.permute.xlu0 %580
    %v583 = vadd.f32 %v573, %v581
    %v584 = vtanh.pop %v583
    %586 = vrot.lane.b32.xlu0 %v584, 32
    %v587 = vpop.permute.xlu0 %586
    %v589 = vmul.f32 %v568, %v587
    %591 = vrot.lane.b32.xlu0 %v589, 64
    %v592 = vpop.permute.xlu0 %591
    %v595 = vrot.slane %v520, 2
    %596 = vrot.lane.b32.xlu0 %v595, 96
    %v597 = vpop.permute.xlu0 %596
    %v599 = vsel %vm116, %v592, %v597
    %v601 = vrot.slane %v599, 6
    %v602 = vsel %vm183, %v601, 0
    %604 = vmatpush.msra.mxu0 0.0
    %605 = vmatpush.msra.mxu0 0.0
    %606 = vmatpush.msra.mxu0 0.0
    %607 = vmatpush.msra.mxu0 0.0
    %608 = vmatpush.msra.mxu0 0.0
    %609 = vmatpush.msra.mxu0 0.0
    %610 = vmatpush.msra.mxu0 0.0
    %611 = vmatpush.msra.mxu0 0.0
    %612 = vmatpush.msra.mxu0 %v73
    %613 = vmatpush.msra.mxu0 %v72
    %614 = vmatpush.msra.mxu0 %v71
    %615 = vmatpush.msra.mxu0 %v70
    %616 = vmatpush.msra.mxu0 %v69
    %617 = vmatpush.msra.mxu0 %v68
    %618 = vmatpush.msra.mxu0 %v67
    %619 = vmatpush.msra.mxu0 %v66
    %620 = vmatmul.f32.gmra.mxu0 %v602
    %v621 = vpop.f32.mrf.mxu0
    %v622 = vadd.f32 %v114, %v621
    %623 = vdwg.mxu0
    %v624 = vxor.u32 %v622, 2147483648
    %v625 = vmul.f32 %v624, 1.442695
    %v626 = vpow.pop %v625
    %v627 = vadd.f32 %v626, 1.0
    %v628 = vrcp.pop %v627
    %v629 = vmul.f32 %v627, %v628
    %v630 = vsub.f32 1.0, %v629
    %v631 = vmul.f32 %v628, %v630
    %v632 = vadd.f32 %v628, %v631
    %vm633 = vweird.f32 %v627
    %vm634 = vweird.f32 %v628
    %vm635 = vmor %vm633, %vm634
    %v636 = vsel %vm635, %v628, %v632
    %v637 = vand.u32 2147483647, %v627
    %vm638 = vcmp.eq.f32.partialorder %v637, 8.507059e+37
    %v639 = vand.u32 %v627, 2147483648
    %v640 = vor.u32 1.1754944e-38, %v639
    %v641 = vsel %vm638, %v640, %v636
    %v642 = vmul.f32 1.0, %v641
    %v643 = vtanh.pop %v622
    %v644 = vmul.f32 %v642, %v514
    %646 = vrot.lane.b32.xlu0 %v643, 32
    %v647 = vpop.permute.xlu0 %646
    %v649 = vmul.f32 %v642, %v647
    %651 = vrot.lane.b32.xlu0 %v649, 32
    %v652 = vpop.permute.xlu0 %651
    %v654 = vadd.f32 %v644, %v652
    %v655 = vtanh.pop %v654
    %657 = vrot.lane.b32.xlu0 %v655, 32
    %v658 = vpop.permute.xlu0 %657
    %v660 = vmul.f32 %v642, %v658
    %v661 = vrot.slane %v589, 6
    %662 = vrot.lane.b32.xlu0 %v661, 64
    %v663 = vpop.permute.xlu0 %662
    %v664 = vsel %vm116, %v663, 0
    %666 = vmatpush.msra.mxu0 0.0
    %667 = vmatpush.msra.mxu0 0.0
    %668 = vmatpush.msra.mxu0 0.0
    %669 = vmatpush.msra.mxu0 0.0
    %670 = vmatpush.msra.mxu0 0.0
    %671 = vmatpush.msra.mxu0 0.0
    %672 = vmatpush.msra.mxu0 0.0
    %673 = vmatpush.msra.mxu0 0.0
    %674 = vmatpush.msra.mxu0 0.0
    %675 = vmatpush.msra.mxu0 0.0
    %676 = vmatpush.msra.mxu0 0.0
    %677 = vmatpush.msra.mxu0 0.0
    %678 = vmatpush.msra.mxu0 %v65
    %679 = vmatpush.msra.mxu0 %v64
    %680 = vmatpush.msra.mxu0 %v63
    %681 = vmatpush.msra.mxu0 %v62
    %682 = vmatmul.f32.gmra.mxu0 %v664
    %v683 = vpop.f32.mrf.mxu0
    %v684 = vadd.f32 0.0, %v683
    %685 = vdwg.mxu0
    %v686 = vadd.f32 %v110, %v684
    %v687 = vxor.u32 %v686, 2147483648
    %v688 = vmul.f32 %v687, 1.442695
    %v689 = vpow.pop %v688
    %v690 = vadd.f32 %v689, 1.0
    %v691 = vrcp.pop %v690
    %v692 = vmul.f32 %v690, %v691
    %v693 = vsub.f32 1.0, %v692
    %v694 = vmul.f32 %v691, %v693
    %v695 = vadd.f32 %v691, %v694
    %vm696 = vweird.f32 %v690
    %vm697 = vweird.f32 %v691
    %vm698 = vmor %vm696, %vm697
    %v699 = vsel %vm698, %v691, %v695
    %v700 = vand.u32 2147483647, %v690
    %vm701 = vcmp.eq.f32.partialorder %v700, 8.507059e+37
    %v702 = vand.u32 %v690, 2147483648
    %v703 = vor.u32 1.1754944e-38, %v702
    %v704 = vsel %vm701, %v703, %v699
    %v705 = vmul.f32 1.0, %v704
    %v706 = vtanh.pop %v686
    %v708 = vrot.slane %v583, 6
    %v710 = vmul.f32 %v705, %v708
    %712 = vrot.lane.b32.xlu0 %v706, 32
    %v713 = vpop.permute.xlu0 %712
    %v715 = vmul.f32 %v705, %v713
    %717 = vrot.lane.b32.xlu0 %v715, 32
    %v718 = vpop.permute.xlu0 %717
    %v720 = vadd.f32 %v710, %v718
    %v721 = vtanh.pop %v720
    %723 = vrot.lane.b32.xlu0 %v721, 32
    %v724 = vpop.permute.xlu0 %723
    %v726 = vmul.f32 %v705, %v724
    %728 = vrot.lane.b32.xlu0 %v726, 64
    %v729 = vpop.permute.xlu0 %728
    %732 = vrot.lane.b32.xlu0 %v660, 96
    %v733 = vpop.permute.xlu0 %732
    %v735 = vsel %vm116, %v729, %v733
    %v737 = vsel %vm183, %v735, 0
    %739 = vmatpush.msra.mxu0 0.0
    %740 = vmatpush.msra.mxu0 0.0
    %741 = vmatpush.msra.mxu0 0.0
    %742 = vmatpush.msra.mxu0 0.0
    %743 = vmatpush.msra.mxu0 0.0
    %744 = vmatpush.msra.mxu0 0.0
    %745 = vmatpush.msra.mxu0 0.0
    %746 = vmatpush.msra.mxu0 0.0
    %747 = vmatpush.msra.mxu0 %v73
    %748 = vmatpush.msra.mxu0 %v72
    %749 = vmatpush.msra.mxu0 %v71
    %750 = vmatpush.msra.mxu0 %v70
    %751 = vmatpush.msra.mxu0 %v69
    %752 = vmatpush.msra.mxu0 %v68
    %753 = vmatpush.msra.mxu0 %v67
    %754 = vmatpush.msra.mxu0 %v66
    %755 = vmatmul.f32.gmra.mxu0 %v737
    %v756 = vpop.f32.mrf.mxu0
    %v757 = vadd.f32 %v114, %v756
    %758 = vdwg.mxu0
    %v759 = vxor.u32 %v757, 2147483648
    %v760 = vmul.f32 %v759, 1.442695
    %v761 = vpow.pop %v760
    %v762 = vadd.f32 %v761, 1.0
    %v763 = vrcp.pop %v762
    %v764 = vmul.f32 %v762, %v763
    %v765 = vsub.f32 1.0, %v764
    %v766 = vmul.f32 %v763, %v765
    %v767 = vadd.f32 %v763, %v766
    %vm768 = vweird.f32 %v762
    %vm769 = vweird.f32 %v763
    %vm770 = vmor %vm768, %vm769
    %v771 = vsel %vm770, %v763, %v767
    %v772 = vand.u32 2147483647, %v762
    %vm773 = vcmp.eq.f32.partialorder %v772, 8.507059e+37
    %v774 = vand.u32 %v762, 2147483648
    %v775 = vor.u32 1.1754944e-38, %v774
    %v776 = vsel %vm773, %v775, %v771
    %v777 = vmul.f32 1.0, %v776
    %v778 = vtanh.pop %v757
    %v779 = vmul.f32 %v777, %v654
    %781 = vrot.lane.b32.xlu0 %v778, 32
    %v782 = vpop.permute.xlu0 %781
    %v784 = vmul.f32 %v777, %v782
    %786 = vrot.lane.b32.xlu0 %v784, 32
    %v787 = vpop.permute.xlu0 %786
    %v789 = vadd.f32 %v779, %v787
    %v790 = vtanh.pop %v789
    %792 = vrot.lane.b32.xlu0 %v790, 32
    %v793 = vpop.permute.xlu0 %792
    %v795 = vmul.f32 %v777, %v793
    %v796 = vsel %vm116, %v729, 0
    %798 = vmatpush.msra.mxu0 0.0
    %799 = vmatpush.msra.mxu0 0.0
    %800 = vmatpush.msra.mxu0 0.0
    %801 = vmatpush.msra.mxu0 0.0
    %802 = vmatpush.msra.mxu0 0.0
    %803 = vmatpush.msra.mxu0 0.0
    %804 = vmatpush.msra.mxu0 0.0
    %805 = vmatpush.msra.mxu0 0.0
    %806 = vmatpush.msra.mxu0 0.0
    %807 = vmatpush.msra.mxu0 0.0
    %808 = vmatpush.msra.mxu0 0.0
    %809 = vmatpush.msra.mxu0 0.0
    %810 = vmatpush.msra.mxu0 %v65
    %811 = vmatpush.msra.mxu0 %v64
    %812 = vmatpush.msra.mxu0 %v63
    %813 = vmatpush.msra.mxu0 %v62
    %814 = vmatmul.f32.gmra.mxu0 %v796
    %v815 = vpop.f32.mrf.mxu0
    %v816 = vadd.f32 0.0, %v815
    %817 = vdwg.mxu0
    %v819 = vrot.slane %v816, 6
    %v821 = vadd.f32 %v110, %v819
    %v822 = vxor.u32 %v821, 2147483648
    %v823 = vmul.f32 %v822, 1.442695
    %v824 = vpow.pop %v823
    %v825 = vadd.f32 %v824, 1.0
    %v826 = vrcp.pop %v825
    %v827 = vmul.f32 %v825, %v826
    %v828 = vsub.f32 1.0, %v827
    %v829 = vmul.f32 %v826, %v828
    %v830 = vadd.f32 %v826, %v829
    %vm831 = vweird.f32 %v825
    %vm832 = vweird.f32 %v826
    %vm833 = vmor %vm831, %vm832
    %v834 = vsel %vm833, %v826, %v830
    %v835 = vand.u32 2147483647, %v825
    %vm836 = vcmp.eq.f32.partialorder %v835, 8.507059e+37
    %v837 = vand.u32 %v825, 2147483648
    %v838 = vor.u32 1.1754944e-38, %v837
    %v839 = vsel %vm836, %v838, %v834
    %v840 = vmul.f32 1.0, %v839
    %v841 = vtanh.pop %v821
    %v843 = vrot.slane %v720, 6
    %v845 = vmul.f32 %v840, %v843
    %847 = vrot.lane.b32.xlu0 %v841, 32
    %v848 = vpop.permute.xlu0 %847
    %v850 = vmul.f32 %v840, %v848
    %852 = vrot.lane.b32.xlu0 %v850, 32
    %v853 = vpop.permute.xlu0 %852
    %v855 = vadd.f32 %v845, %v853
    %v856 = vtanh.pop %v855
    %858 = vrot.lane.b32.xlu0 %v856, 32
    %v859 = vpop.permute.xlu0 %858
    %v861 = vmul.f32 %v840, %v859
    %863 = vrot.lane.b32.xlu0 %v861, 64
    %v864 = vpop.permute.xlu0 %863
    %v867 = vrot.slane %v795, 6
    %868 = vrot.lane.b32.xlu0 %v867, 96
    %v869 = vpop.permute.xlu0 %868
    %v871 = vsel %vm116, %v864, %v869
    %v873 = vrot.slane %v871, 2
    %v874 = vsel %vm183, %v873, 0
    %876 = vmatpush.msra.mxu0 0.0
    %877 = vmatpush.msra.mxu0 0.0
    %878 = vmatpush.msra.mxu0 0.0
    %879 = vmatpush.msra.mxu0 0.0
    %880 = vmatpush.msra.mxu0 0.0
    %881 = vmatpush.msra.mxu0 0.0
    %882 = vmatpush.msra.mxu0 0.0
    %883 = vmatpush.msra.mxu0 0.0
    %884 = vmatpush.msra.mxu0 %v73
    %885 = vmatpush.msra.mxu0 %v72
    %886 = vmatpush.msra.mxu0 %v71
    %887 = vmatpush.msra.mxu0 %v70
    %888 = vmatpush.msra.mxu0 %v69
    %889 = vmatpush.msra.mxu0 %v68
    %890 = vmatpush.msra.mxu0 %v67
    %891 = vmatpush.msra.mxu0 %v66
    %892 = vmatmul.f32.gmra.mxu0 %v874
    %v893 = vpop.f32.mrf.mxu0
    %v894 = vadd.f32 %v114, %v893
    %895 = vdwg.mxu0
    %v896 = vxor.u32 %v894, 2147483648
    %v897 = vmul.f32 %v896, 1.442695
    %v898 = vpow.pop %v897
    %v899 = vadd.f32 %v898, 1.0
    %v900 = vrcp.pop %v899
    %v901 = vmul.f32 %v899, %v900
    %v902 = vsub.f32 1.0, %v901
    %v903 = vmul.f32 %v900, %v902
    %v904 = vadd.f32 %v900, %v903
    %vm905 = vweird.f32 %v899
    %vm906 = vweird.f32 %v900
    %vm907 = vmor %vm905, %vm906
    %v908 = vsel %vm907, %v900, %v904
    %v909 = vand.u32 2147483647, %v899
    %vm910 = vcmp.eq.f32.partialorder %v909, 8.507059e+37
    %v911 = vand.u32 %v899, 2147483648
    %v912 = vor.u32 1.1754944e-38, %v911
    %v913 = vsel %vm910, %v912, %v908
    %v914 = vmul.f32 1.0, %v913
    %v915 = vtanh.pop %v894
    %v916 = vmul.f32 %v914, %v789
    %918 = vrot.lane.b32.xlu0 %v915, 32
    %v919 = vpop.permute.xlu0 %918
    %v921 = vmul.f32 %v914, %v919
    %923 = vrot.lane.b32.xlu0 %v921, 32
    %v924 = vpop.permute.xlu0 %923
    %v926 = vadd.f32 %v916, %v924
    %v927 = vtanh.pop %v926
    %929 = vrot.lane.b32.xlu0 %v927, 32
    %v930 = vpop.permute.xlu0 %929
    %v932 = vmul.f32 %v914, %v930
    %v933 = vrot.slane %v861, 2
    %934 = vrot.lane.b32.xlu0 %v933, 64
    %v935 = vpop.permute.xlu0 %934
    %v936 = vsel %vm116, %v935, 0
    %938 = vmatpush.msra.mxu0 0.0
    %939 = vmatpush.msra.mxu0 0.0
    %940 = vmatpush.msra.mxu0 0.0
    %941 = vmatpush.msra.mxu0 0.0
    %942 = vmatpush.msra.mxu0 0.0
    %943 = vmatpush.msra.mxu0 0.0
    %944 = vmatpush.msra.mxu0 0.0
    %945 = vmatpush.msra.mxu0 0.0
    %946 = vmatpush.msra.mxu0 0.0
    %947 = vmatpush.msra.mxu0 0.0
    %948 = vmatpush.msra.mxu0 0.0
    %949 = vmatpush.msra.mxu0 0.0
    %950 = vmatpush.msra.mxu0 %v65
    %951 = vmatpush.msra.mxu0 %v64
    %952 = vmatpush.msra.mxu0 %v63
    %953 = vmatpush.msra.mxu0 %v62
    %954 = vmatmul.f32.gmra.mxu0 %v936
    %v955 = vpop.f32.mrf.mxu0
    %v956 = vadd.f32 0.0, %v955
    %957 = vdwg.mxu0
    %v959 = vrot.slane %v956, 4
    %v961 = vadd.f32 %v110, %v959
    %v962 = vxor.u32 %v961, 2147483648
    %v963 = vmul.f32 %v962, 1.442695
    %v964 = vpow.pop %v963
    %v965 = vadd.f32 %v964, 1.0
    %v966 = vrcp.pop %v965
    %v967 = vmul.f32 %v965, %v966
    %v968 = vsub.f32 1.0, %v967
    %v969 = vmul.f32 %v966, %v968
    %v970 = vadd.f32 %v966, %v969
    %vm971 = vweird.f32 %v965
    %vm972 = vweird.f32 %v966
    %vm973 = vmor %vm971, %vm972
    %v974 = vsel %vm973, %v966, %v970
    %v975 = vand.u32 2147483647, %v965
    %vm976 = vcmp.eq.f32.partialorder %v975, 8.507059e+37
    %v977 = vand.u32 %v965, 2147483648
    %v978 = vor.u32 1.1754944e-38, %v977
    %v979 = vsel %vm976, %v978, %v974
    %v980 = vmul.f32 1.0, %v979
    %v981 = vtanh.pop %v961
    %v983 = vrot.slane %v855, 6
    %v985 = vmul.f32 %v980, %v983
    %987 = vrot.lane.b32.xlu0 %v981, 32
    %v988 = vpop.permute.xlu0 %987
    %v990 = vmul.f32 %v980, %v988
    %992 = vrot.lane.b32.xlu0 %v990, 32
    %v993 = vpop.permute.xlu0 %992
    %v995 = vadd.f32 %v985, %v993
    %v996 = vtanh.pop %v995
    %998 = vrot.lane.b32.xlu0 %v996, 32
    %v999 = vpop.permute.xlu0 %998
    %v1001 = vmul.f32 %v980, %v999
    %1003 = vrot.lane.b32.xlu0 %v1001, 64
    %v1004 = vpop.permute.xlu0 %1003
    %v1007 = vrot.slane %v932, 4
    %1008 = vrot.lane.b32.xlu0 %v1007, 96
    %v1009 = vpop.permute.xlu0 %1008
    %v1011 = vsel %vm116, %v1004, %v1009
    %v1013 = vrot.slane %v1011, 4
    %v1014 = vsel %vm183, %v1013, 0
    %1016 = vmatpush.msra.mxu0 0.0
    %1017 = vmatpush.msra.mxu0 0.0
    %1018 = vmatpush.msra.mxu0 0.0
    %1019 = vmatpush.msra.mxu0 0.0
    %1020 = vmatpush.msra.mxu0 0.0
    %1021 = vmatpush.msra.mxu0 0.0
    %1022 = vmatpush.msra.mxu0 0.0
    %1023 = vmatpush.msra.mxu0 0.0
    %1024 = vmatpush.msra.mxu0 %v73
    %1025 = vmatpush.msra.mxu0 %v72
    %1026 = vmatpush.msra.mxu0 %v71
    %1027 = vmatpush.msra.mxu0 %v70
    %1028 = vmatpush.msra.mxu0 %v69
    %1029 = vmatpush.msra.mxu0 %v68
    %1030 = vmatpush.msra.mxu0 %v67
    %1031 = vmatpush.msra.mxu0 %v66
    %1032 = vmatmul.f32.gmra.mxu0 %v1014
    %v1033 = vpop.f32.mrf.mxu0
    %v1034 = vadd.f32 %v114, %v1033
    %1035 = vdwg.mxu0
    %v1036 = vxor.u32 %v1034, 2147483648
    %v1037 = vmul.f32 %v1036, 1.442695
    %v1038 = vpow.pop %v1037
    %v1039 = vadd.f32 %v1038, 1.0
    %v1040 = vrcp.pop %v1039
    %v1041 = vmul.f32 %v1039, %v1040
    %v1042 = vsub.f32 1.0, %v1041
    %v1043 = vmul.f32 %v1040, %v1042
    %v1044 = vadd.f32 %v1040, %v1043
    %vm1045 = vweird.f32 %v1039
    %vm1046 = vweird.f32 %v1040
    %vm1047 = vmor %vm1045, %vm1046
    %v1048 = vsel %vm1047, %v1040, %v1044
    %v1049 = vand.u32 2147483647, %v1039
    %vm1050 = vcmp.eq.f32.partialorder %v1049, 8.507059e+37
    %v1051 = vand.u32 %v1039, 2147483648
    %v1052 = vor.u32 1.1754944e-38, %v1051
    %v1053 = vsel %vm1050, %v1052, %v1048
    %v1054 = vmul.f32 1.0, %v1053
    %v1055 = vtanh.pop %v1034
    %v1056 = vmul.f32 %v1054, %v926
    %1058 = vrot.lane.b32.xlu0 %v1055, 32
    %v1059 = vpop.permute.xlu0 %1058
    %v1061 = vmul.f32 %v1054, %v1059
    %1063 = vrot.lane.b32.xlu0 %v1061, 32
    %v1064 = vpop.permute.xlu0 %1063
    %v1066 = vadd.f32 %v1056, %v1064
    %v1067 = vtanh.pop %v1066
    %1069 = vrot.lane.b32.xlu0 %v1067, 32
    %v1070 = vpop.permute.xlu0 %1069
    %v1072 = vmul.f32 %v1054, %v1070
    %v1073 = vrot.slane %v1001, 4
    %1074 = vrot.lane.b32.xlu0 %v1073, 64
    %v1075 = vpop.permute.xlu0 %1074
    %v1076 = vsel %vm116, %v1075, 0
    %1078 = vmatpush.msra.mxu0 0.0
    %1079 = vmatpush.msra.mxu0 0.0
    %1080 = vmatpush.msra.mxu0 0.0
    %1081 = vmatpush.msra.mxu0 0.0
    %1082 = vmatpush.msra.mxu0 0.0
    %1083 = vmatpush.msra.mxu0 0.0
    %1084 = vmatpush.msra.mxu0 0.0
    %1085 = vmatpush.msra.mxu0 0.0
    %1086 = vmatpush.msra.mxu0 0.0
    %1087 = vmatpush.msra.mxu0 0.0
    %1088 = vmatpush.msra.mxu0 0.0
    %1089 = vmatpush.msra.mxu0 0.0
    %1090 = vmatpush.msra.mxu0 %v65
    %1091 = vmatpush.msra.mxu0 %v64
    %1092 = vmatpush.msra.mxu0 %v63
    %1093 = vmatpush.msra.mxu0 %v62
    %1094 = vmatmul.f32.gmra.mxu0 %v1076
    %v1095 = vpop.f32.mrf.mxu0
    %v1096 = vadd.f32 0.0, %v1095
    %1097 = vdwg.mxu0
    %v1099 = vrot.slane %v1096, 2
    %v1101 = vadd.f32 %v110, %v1099
    %v1102 = vxor.u32 %v1101, 2147483648
    %v1103 = vmul.f32 %v1102, 1.442695
    %v1104 = vpow.pop %v1103
    %v1105 = vadd.f32 %v1104, 1.0
    %v1106 = vrcp.pop %v1105
    %v1107 = vmul.f32 %v1105, %v1106
    %v1108 = vsub.f32 1.0, %v1107
    %v1109 = vmul.f32 %v1106, %v1108
    %v1110 = vadd.f32 %v1106, %v1109
    %vm1111 = vweird.f32 %v1105
    %vm1112 = vweird.f32 %v1106
    %vm1113 = vmor %vm1111, %vm1112
    %v1114 = vsel %vm1113, %v1106, %v1110
    %v1115 = vand.u32 2147483647, %v1105
    %vm1116 = vcmp.eq.f32.partialorder %v1115, 8.507059e+37
    %v1117 = vand.u32 %v1105, 2147483648
    %v1118 = vor.u32 1.1754944e-38, %v1117
    %v1119 = vsel %vm1116, %v1118, %v1114
    %v1120 = vmul.f32 1.0, %v1119
    %v1121 = vtanh.pop %v1101
    %v1123 = vrot.slane %v995, 6
    %v1125 = vmul.f32 %v1120, %v1123
    %1127 = vrot.lane.b32.xlu0 %v1121, 32
    %v1128 = vpop.permute.xlu0 %1127
    %v1130 = vmul.f32 %v1120, %v1128
    %1132 = vrot.lane.b32.xlu0 %v1130, 32
    %v1133 = vpop.permute.xlu0 %1132
    %v1135 = vadd.f32 %v1125, %v1133
    %v1136 = vtanh.pop %v1135
    %1138 = vrot.lane.b32.xlu0 %v1136, 32
    %v1139 = vpop.permute.xlu0 %1138
    %v1141 = vmul.f32 %v1120, %v1139
    %1143 = vrot.lane.b32.xlu0 %v1141, 64
    %v1144 = vpop.permute.xlu0 %1143
    %v1147 = vrot.slane %v1072, 2
    %1148 = vrot.lane.b32.xlu0 %v1147, 96
    %v1149 = vpop.permute.xlu0 %1148
    %v1151 = vsel %vm116, %v1144, %v1149
    %v1153 = vrot.slane %v1151, 6
    %v1154 = vsel %vm183, %v1153, 0
    %1156 = vmatpush.msra.mxu0 0.0
    %1157 = vmatpush.msra.mxu0 0.0
    %1158 = vmatpush.msra.mxu0 0.0
    %1159 = vmatpush.msra.mxu0 0.0
    %1160 = vmatpush.msra.mxu0 0.0
    %1161 = vmatpush.msra.mxu0 0.0
    %1162 = vmatpush.msra.mxu0 0.0
    %1163 = vmatpush.msra.mxu0 0.0
    %1164 = vmatpush.msra.mxu0 %v73
    %1165 = vmatpush.msra.mxu0 %v72
    %1166 = vmatpush.msra.mxu0 %v71
    %1167 = vmatpush.msra.mxu0 %v70
    %1168 = vmatpush.msra.mxu0 %v69
    %1169 = vmatpush.msra.mxu0 %v68
    %1170 = vmatpush.msra.mxu0 %v67
    %1171 = vmatpush.msra.mxu0 %v66
    %1172 = vmatmul.f32.gmra.mxu0 %v1154
    %v1173 = vpop.f32.mrf.mxu0
    %v1174 = vadd.f32 %v114, %v1173
    %1175 = vdwg.mxu0
    %v1176 = vxor.u32 %v1174, 2147483648
    %v1177 = vmul.f32 %v1176, 1.442695
    %v1178 = vpow.pop %v1177
    %v1179 = vadd.f32 %v1178, 1.0
    %v1180 = vrcp.pop %v1179
    %v1181 = vmul.f32 %v1179, %v1180
    %v1182 = vsub.f32 1.0, %v1181
    %v1183 = vmul.f32 %v1180, %v1182
    %v1184 = vadd.f32 %v1180, %v1183
    %vm1185 = vweird.f32 %v1179
    %vm1186 = vweird.f32 %v1180
    %vm1187 = vmor %vm1185, %vm1186
    %v1188 = vsel %vm1187, %v1180, %v1184
    %v1189 = vand.u32 2147483647, %v1179
    %vm1190 = vcmp.eq.f32.partialorder %v1189, 8.507059e+37
    %v1191 = vand.u32 %v1179, 2147483648
    %v1192 = vor.u32 1.1754944e-38, %v1191
    %v1193 = vsel %vm1190, %v1192, %v1188
    %v1194 = vmul.f32 1.0, %v1193
    %v1195 = vtanh.pop %v1174
    %v1196 = vmul.f32 %v1194, %v1066
    %1198 = vrot.lane.b32.xlu0 %v1195, 32
    %v1199 = vpop.permute.xlu0 %1198
    %v1201 = vmul.f32 %v1194, %v1199
    %1203 = vrot.lane.b32.xlu0 %v1201, 32
    %v1204 = vpop.permute.xlu0 %1203
    %v1206 = vadd.f32 %v1196, %v1204
    %v1207 = vtanh.pop %v1206
    %1209 = vrot.lane.b32.xlu0 %v1207, 32
    %v1210 = vpop.permute.xlu0 %1209
    %v1212 = vmul.f32 %v1194, %v1210
    %v1213 = vld [vmem:[%s6] sm:$0xff]
    %v1214 = vld [vmem:[%s6 + $0x8] sm:$0xff]
    %v1215 = vld [vmem:[%s6 + $0x10] sm:$0xff]
    %v1216 = vld [vmem:[%s6 + $0x18] sm:$0xff]
    %v1217 = vld [vmem:[%s7] sm:$0x1]
    %v1219 = vperm.slane %v1217, 0
    %1222 = vrot.lane.b32.xlu0 %v1212, 64
    %v1223 = vpop.permute.xlu0 %1222
    %v1224 = vsel %vm116, %v1223, 0
    %1226 = vmatpush.msra.mxu0 0.0
    %1227 = vmatpush.msra.mxu0 0.0
    %1228 = vmatpush.msra.mxu0 0.0
    %1229 = vmatpush.msra.mxu0 0.0
    %1230 = vmatpush.msra.mxu0 0.0
    %1231 = vmatpush.msra.mxu0 0.0
    %1232 = vmatpush.msra.mxu0 0.0
    %1233 = vmatpush.msra.mxu0 0.0
    %1234 = vmatpush.msra.mxu0 0.0
    %1235 = vmatpush.msra.mxu0 0.0
    %1236 = vmatpush.msra.mxu0 0.0
    %1237 = vmatpush.msra.mxu0 0.0
    %1238 = vmatpush.msra.mxu0 %v1216
    %1239 = vmatpush.msra.mxu0 %v1215
    %1240 = vmatpush.msra.mxu0 %v1214
    %1241 = vmatpush.msra.mxu0 %v1213
    %1242 = vmatmul.f32.gmra.mxu0 %v1224
    %v1243 = vpop.f32.mrf.mxu0
    %v1244 = vadd.f32 %v1219, %v1243
    %1245 = vdwg.mxu0
    %vm1246 = vcmask 58368
    %1247 = vst.msk [vmem:[#allocation7] sm:$0x3] %vm1246, %v1244
    // Predicated region
    $region42: #{question_type_forward.1} parent=1 // pred_check
      _
    $region43: #{question_type_forward.1} parent=1 // pred_check_branch
      %1249 = sbr.rel (0) target = $region45
    $region44: #{question_type_forward.1} parent=1 // pred_region
      %1251 = vsyncadd [#allocation4], 0
      %s1253 = sshll.u32 [#allocation7], 4
      %s1254 = int_to_ptr.vmem [resolvable:$true] %s1253
      %s1255 = sshll.u32 %s8, 4
      %s1256 = int_to_ptr.hbm [resolvable:$true] %s1255
      %1258 = dma.vmem_to_hbm [thread:$0]  %s1254, 32, %s1256, [#allocation4]
    $region45: #{question_type_forward.1} parent=1 // pred_fallthru
      _
    // Predicated region
    $region46: #{question_type_forward.1} parent=1 // pred_check
      _
    $region47: #{question_type_forward.1} parent=1 // pred_check_branch
      %1260 = sbr.rel (0) target = $region49
    $region48: #{question_type_forward.1} parent=1 // pred_region
      %1262 = dma.done [#allocation4], 32
    $region49: #{question_type_forward.1} parent=1 // pred_fallthru
      _
    %1263 = vsyncpa [#allocation3], 1
    %1264 = vsyncpa [#allocation6], 1
    %1265 = vsyncpa [#allocation4], 1

</llo_original>
